<compile_context>
chip_gen: v6e
topology: v6e:2x2x1
jax: 0.10.0
libtpu: 0.0.40
codegen_flags: <defaults>
</compile_context>

<pallas_src>
import functools

import numpy as np
import jax
import jax.numpy as jnp
from jax.experimental import pallas as pl
from jax.experimental.pallas import tpu as pltpu

N_DCT = 8              # DCT kernel size (fixed in the module)
_PAD = N_DCT // 2      # reflect pad = 4
_HALF = N_DCT // 2
_LANE = 128
_BLOCK_BUDGET = 6 * 1024 * 1024   # per-step in+out block budget (double-buffered << 32 MiB)


def _dct_coeffs_np(N: int = N_DCT) -> np.ndarray:
    """Deterministic DCT kernel, identical to DCTTransform._create_dct_kernel."""
    k = np.arange(N, dtype=np.float64)[:, None]
    n = np.arange(N, dtype=np.float64)[None, :]
    kern = np.cos((n + 0.5) * (k * np.pi / N))
    kern[0, :] /= np.sqrt(2.0)
    return kern


# Baked at import time; used as Python float constants inside the kernel bodies.
_DCT_COEFFS = _dct_coeffs_np()


def _cdiv(a: int, b: int) -> int:
    return -(-a // b)


# ----------------------------------------------------------------------------
# Kernel bodies
# ----------------------------------------------------------------------------
def _dct_planes_kernel(x_ref, o_ref, *, row_strip):
    """Planes-on-lanes layout (P >= 128).

    x_ref: (Hp, Wp, TB) reflect-padded planes (original dtype), TB on lanes.
    o_ref: (Ho, Wo, TB), Ho = Hp - 7, Wo = Wp - 7.
    """
    Ho, Wo, TB = o_ref.shape
    for r0 in range(0, Ho, row_strip):
        rh = min(row_strip, Ho - r0)
        acc = jnp.zeros((rh, Wo, TB), jnp.float32)
        for p in range(N_DCT):
            # One ALIGNED load per row shift p: leading-dim offset only, full
            # sublane/lane extent.  Upcast to f32 here (DMA stays in the
            # original dtype).
            row = x_ref[r0 + p:r0 + p + rh, :, :].astype(jnp.float32)
            even = (p % 2 == 0)
            for q in range(_HALF):
                c = float(_DCT_COEFFS[p, q])
                # Column shifts derived IN-REGISTER (sublane shifts -> XLU),
                # folded into the DCT column-symmetry butterfly
                #   K[p, 7-q] = (-1)^p * K[p, q].
                a = row[:, q:q + Wo, :]
                b = row[:, N_DCT - 1 - q:N_DCT - 1 - q + Wo, :]
                pair = a + b if even else a - b
                acc = acc + c * pair
        o_ref[r0:r0 + rh, :, :] = acc.astype(o_ref.dtype)


def _dct_small_kernel(x_ref, o_ref, *, row_strip):
    """Plane-leading (W-on-lanes) layout for small P (no lane-padding waste).

    x_ref: (tp, Hp, Wp) reflect-padded planes (original dtype).
    o_ref: (tp, Ho, Wo).
    """
    tp, Ho, Wo = o_ref.shape
    for r0 in range(0, Ho, row_strip):
        rh = min(row_strip, Ho - r0)
        # One load per strip: all rows needed for every row shift of the strip.
        rows = x_ref[:, r0:r0 + rh + N_DCT - 1, :].astype(jnp.float32)
        acc = jnp.zeros((tp, rh, Wo), jnp.float32)
        for p in range(N_DCT):
            rp = rows[:, p:p + rh, :]            # sublane shift, in-register
            even = (p % 2 == 0)
            for q in range(_HALF):
                c = float(_DCT_COEFFS[p, q])
                a = rp[:, :, q:q + Wo]           # lane shifts, in-register
                b = rp[:, :, N_DCT - 1 - q:N_DCT - 1 - q + Wo]
                pair = a + b if even else a - b
                acc = acc + c * pair
        o_ref[:, r0:r0 + rh, :] = acc.astype(o_ref.dtype)


# ----------------------------------------------------------------------------
# Tiling heuristics
# ----------------------------------------------------------------------------
def _pick_tb(P, hp, wp, ho, wo, in_bytes, out_bytes):
    """Planes-per-step for the planes-on-lanes path (multiple of 128), or None."""
    per_plane = hp * wp * in_bytes + ho * wo * out_bytes
    for tb in (512, 256, 128):
        if tb > 128 and P < 2 * tb:
            continue                      # keep >= 2 parallel grid steps (v7x dual-TC)
        if per_plane * tb <= _BLOCK_BUDGET:
            return tb
    return None                           # block too large -> plane-leading path


def _pick_tp(P, hp, wp, ho, wo, in_bytes, out_bytes):
    """Planes-per-step for the plane-leading path."""
    per_plane = hp * wp * in_bytes + ho * wo * out_bytes
    cap = max(1, _BLOCK_BUDGET // per_plane)
    return max(1, min(cap, _cdiv(P, 2)))  # ceil(P/2) -> >= 2 grid steps when P >= 2


def _row_strip_planes(tb, wp, ho, vreg_budget=16):
    """Output-row strip for the planes-on-lanes kernel (bounds row/acc vregs)."""
    per_row = max(1, _cdiv(wp, 8) * max(1, tb // _LANE))
    return max(1, min(vreg_budget // per_row, 8, ho))


def _row_strip_small(tp, wp, ho, vreg_budget=24):
    """Output-row strip for the plane-leading kernel (bounds the strip load)."""
    per_row_group = max(1, tp * _cdiv(wp, _LANE))
    groups = max(1, vreg_budget // per_row_group)
    return max(1, min(groups * 8 - (N_DCT - 1), ho))


# ----------------------------------------------------------------------------
# Wrapper
# ----------------------------------------------------------------------------
def dct_transform(x: jnp.ndarray) -> jnp.ndarray:
    """Pallas implementation of DCTTransform.forward. x: (B, C, H, W) float."""
    B, C, H, W = x.shape
    assert H > _PAD and W > _PAD, "reflect pad of 4 requires H, W >= 5"

    orig_dtype = x.dtype
    P = B * C
    Hp, Wp = H + 2 * _PAD, W + 2 * _PAD
    Ho, Wo = H + 1, W + 1
    ib = ob = jnp.dtype(orig_dtype).itemsize

    # Wrapper plumbing kept in the ORIGINAL dtype (no f32 layout passes; the
    # kernel upcasts per strip and writes the output dtype directly).
    xp = jnp.pad(x.reshape(P, H, W), ((0, 0), (_PAD, _PAD), (_PAD, _PAD)),
                 mode="reflect")

    tb = _pick_tb(P, Hp, Wp, Ho, Wo, ib, ob) if P >= _LANE else None
    vmem_limit = 32 * 1024 * 1024

    if tb is not None:
        # Planes-on-lanes: lane-dense compute and unmasked stores.
        xt = jnp.transpose(xp, (1, 2, 0))                       # (Hp, Wp, P)
        P_pad = _cdiv(P, tb) * tb
        if P_pad != P:
            xt = jnp.pad(xt, ((0, 0), (0, 0), (0, P_pad - P)))
        rs = _row_strip_planes(tb, Wp, Ho)
        out = pl.pallas_call(
            functools.partial(_dct_planes_kernel, row_strip=rs),
            out_shape=jax.ShapeDtypeStruct((Ho, Wo, P_pad), orig_dtype),
            grid_spec=pltpu.PrefetchScalarGridSpec(
                num_scalar_prefetch=0,
                grid=(P_pad // tb,),
                in_specs=[pl.BlockSpec((Hp, Wp, tb), lambda i: (0, 0, i))],
                out_specs=pl.BlockSpec((Ho, Wo, tb), lambda i: (0, 0, i)),
            ),
            compiler_params=pltpu.CompilerParams(
                dimension_semantics=("parallel",),
                vmem_limit_bytes=vmem_limit,
            ),
        )(xt)
        y = jnp.transpose(out[:, :, :P], (2, 0, 1))
    else:
        # Small-P path: planes stay on the leading axis (no transposes, no
        # 128-lane zero padding); W on lanes, H on sublanes.
        tp = _pick_tp(P, Hp, Wp, Ho, Wo, ib, ob)
        G = _cdiv(P, tp)
        P_pad = G * tp
        if P_pad != P:
            xp = jnp.pad(xp, ((0, P_pad - P), (0, 0), (0, 0)))
        rs = _row_strip_small(tp, Wp, Ho)
        out = pl.pallas_call(
            functools.partial(_dct_small_kernel, row_strip=rs),
            out_shape=jax.ShapeDtypeStruct((P_pad, Ho, Wo), orig_dtype),
            grid_spec=pltpu.PrefetchScalarGridSpec(
                num_scalar_prefetch=0,
                grid=(G,),
                in_specs=[pl.BlockSpec((tp, Hp, Wp), lambda i: (i, 0, 0))],
                out_specs=pl.BlockSpec((tp, Ho, Wo), lambda i: (i, 0, 0)),
            ),
            compiler_params=pltpu.CompilerParams(
                dimension_semantics=("parallel",),
                vmem_limit_bytes=vmem_limit,
            ),
        )(xp)
        y = out[:P]

    return y.reshape(B, C, Ho, Wo)


# ----------------------------------------------------------------------------
# Reference & self-test
# ----------------------------------------------------------------------------
def _reference(x: jnp.ndarray) -> jnp.ndarray:
    """Independent reference using lax.conv (matches F.conv2d cross-correlation)."""
    B, C, H, W = x.shape
    xf = x.reshape(B * C, 1, H, W).astype(jnp.float32)
    xpad = jnp.pad(xf, ((0, 0), (0, 0), (_PAD, _PAD), (_PAD, _PAD)), mode="reflect")
    w = jnp.asarray(_DCT_COEFFS, dtype=jnp.float32).reshape(1, 1, N_DCT, N_DCT)
    y = jax.lax.conv_general_dilated(
        xpad, w, window_strides=(1, 1), padding="VALID",
        dimension_numbers=("NCHW", "OIHW", "NCHW"),
        precision=jax.lax.Precision.HIGHEST,
    )
    return y.reshape(B, C, H + 1, W + 1).astype(x.dtype)


if __name__ == "__main__":
    key = jax.random.PRNGKey(0)

    # Small module-consistent shape (exercises the plane-leading small-P path).
    B, C, H, W = 2, 4, 16, 16
    x = jax.random.normal(key, (B, C, H, W), dtype=jnp.float32)
    y = jax.block_until_ready(dct_transform(x))
    assert y.shape == (B, C, H + 1, W + 1), y.shape
    y_ref = jax.block_until_ready(_reference(x))
    np.testing.assert_allclose(np.asarray(y), np.asarray(y_ref), rtol=1e-4, atol=1e-4)

    # Also exercise the planes-on-lanes path (P = B*C >= 128).
    x2 = jax.random.normal(jax.random.PRNGKey(0), (1, 128, 16, 16), dtype=jnp.float32)
    y2 = jax.block_until_ready(dct_transform(x2))
    assert y2.shape == (1, 128, H + 1, W + 1), y2.shape
    y2_ref = jax.block_until_ready(_reference(x2))
    np.testing.assert_allclose(np.asarray(y2), np.asarray(y2_ref), rtol=1e-4, atol=1e-4)

    print("KERNEL_OK")
</pallas_src>

<mosaic_0001>
module attributes {stable_mosaic.version = 11 : i64} {
  func.func @_dct_small_kernel(%arg0: i32, %arg1: memref<4x24x24xf32, #tpu.memory_space<vmem>>, %arg2: memref<4x17x17xf32, #tpu.memory_space<vmem>>) attributes {dimension_semantics = [#tpu.dimension_semantics<parallel>], iteration_bounds = array<i64: 2>, scalar_prefetch = 0 : i64, scratch_operands = 0 : i64, tpu.core_type = #tpu.core_type<tc>, window_params = [{transform_indices = @transform_0, window_bounds = array<i64: 4, 24, 24>}, {transform_indices = @transform_1, window_bounds = array<i64: 4, 17, 17>}]} {
    %c0 = arith.constant 0 : index
    %c0_0 = arith.constant 0 : index
    %c0_1 = arith.constant 0 : index
    %0 = vector.load %arg1[%c0, %c0_0, %c0_1] : memref<4x24x24xf32, #tpu.memory_space<vmem>>, vector<4x24x24xf32>
    %cst = arith.constant 0.000000e+00 : f32
    %1 = vector.broadcast %cst : f32 to vector<4x17x17xf32>
    %2 = vector.extract_strided_slice %0 {offsets = [0, 0, 0], sizes = [4, 17, 24], strides = [1, 1, 1]} : vector<4x24x24xf32> to vector<4x17x24xf32>
    %3 = vector.extract_strided_slice %2 {offsets = [0, 0, 0], sizes = [4, 17, 17], strides = [1, 1, 1]} : vector<4x17x24xf32> to vector<4x17x17xf32>
    %4 = vector.extract_strided_slice %2 {offsets = [0, 0, 7], sizes = [4, 17, 17], strides = [1, 1, 1]} : vector<4x17x24xf32> to vector<4x17x17xf32>
    %5 = arith.addf %3, %4 : vector<4x17x17xf32>
    %cst_2 = arith.constant 0.707106769 : f32
    %6 = vector.broadcast %cst_2 : f32 to vector<4x17x17xf32>
    %7 = arith.mulf %6, %5 : vector<4x17x17xf32>
    %8 = arith.addf %1, %7 : vector<4x17x17xf32>
    %9 = vector.extract_strided_slice %2 {offsets = [0, 0, 1], sizes = [4, 17, 17], strides = [1, 1, 1]} : vector<4x17x24xf32> to vector<4x17x17xf32>
    %10 = vector.extract_strided_slice %2 {offsets = [0, 0, 6], sizes = [4, 17, 17], strides = [1, 1, 1]} : vector<4x17x24xf32> to vector<4x17x17xf32>
    %11 = arith.addf %9, %10 : vector<4x17x17xf32>
    %cst_3 = arith.constant 0.707106769 : f32
    %12 = vector.broadcast %cst_3 : f32 to vector<4x17x17xf32>
    %13 = arith.mulf %12, %11 : vector<4x17x17xf32>
    %14 = arith.addf %8, %13 : vector<4x17x17xf32>
    %15 = vector.extract_strided_slice %2 {offsets = [0, 0, 2], sizes = [4, 17, 17], strides = [1, 1, 1]} : vector<4x17x24xf32> to vector<4x17x17xf32>
    %16 = vector.extract_strided_slice %2 {offsets = [0, 0, 5], sizes = [4, 17, 17], strides = [1, 1, 1]} : vector<4x17x24xf32> to vector<4x17x17xf32>
    %17 = arith.addf %15, %16 : vector<4x17x17xf32>
    %cst_4 = arith.constant 0.707106769 : f32
    %18 = vector.broadcast %cst_4 : f32 to vector<4x17x17xf32>
    %19 = arith.mulf %18, %17 : vector<4x17x17xf32>
    %20 = arith.addf %14, %19 : vector<4x17x17xf32>
    %21 = vector.extract_strided_slice %2 {offsets = [0, 0, 3], sizes = [4, 17, 17], strides = [1, 1, 1]} : vector<4x17x24xf32> to vector<4x17x17xf32>
    %22 = vector.extract_strided_slice %2 {offsets = [0, 0, 4], sizes = [4, 17, 17], strides = [1, 1, 1]} : vector<4x17x24xf32> to vector<4x17x17xf32>
    %23 = arith.addf %21, %22 : vector<4x17x17xf32>
    %cst_5 = arith.constant 0.707106769 : f32
    %24 = vector.broadcast %cst_5 : f32 to vector<4x17x17xf32>
    %25 = arith.mulf %24, %23 : vector<4x17x17xf32>
    %26 = arith.addf %20, %25 : vector<4x17x17xf32>
    %27 = vector.extract_strided_slice %0 {offsets = [0, 1, 0], sizes = [4, 17, 24], strides = [1, 1, 1]} : vector<4x24x24xf32> to vector<4x17x24xf32>
    %28 = vector.extract_strided_slice %27 {offsets = [0, 0, 0], sizes = [4, 17, 17], strides = [1, 1, 1]} : vector<4x17x24xf32> to vector<4x17x17xf32>
    %29 = vector.extract_strided_slice %27 {offsets = [0, 0, 7], sizes = [4, 17, 17], strides = [1, 1, 1]} : vector<4x17x24xf32> to vector<4x17x17xf32>
    %30 = arith.subf %28, %29 : vector<4x17x17xf32>
    %cst_6 = arith.constant 0.98078525 : f32
    %31 = vector.broadcast %cst_6 : f32 to vector<4x17x17xf32>
    %32 = arith.mulf %31, %30 : vector<4x17x17xf32>
    %33 = arith.addf %26, %32 : vector<4x17x17xf32>
    %34 = vector.extract_strided_slice %27 {offsets = [0, 0, 1], sizes = [4, 17, 17], strides = [1, 1, 1]} : vector<4x17x24xf32> to vector<4x17x17xf32>
    %35 = vector.extract_strided_slice %27 {offsets = [0, 0, 6], sizes = [4, 17, 17], strides = [1, 1, 1]} : vector<4x17x24xf32> to vector<4x17x17xf32>
    %36 = arith.subf %34, %35 : vector<4x17x17xf32>
    %cst_7 = arith.constant 0.831469595 : f32
    %37 = vector.broadcast %cst_7 : f32 to vector<4x17x17xf32>
    %38 = arith.mulf %37, %36 : vector<4x17x17xf32>
    %39 = arith.addf %33, %38 : vector<4x17x17xf32>
    %40 = vector.extract_strided_slice %27 {offsets = [0, 0, 2], sizes = [4, 17, 17], strides = [1, 1, 1]} : vector<4x17x24xf32> to vector<4x17x17xf32>
    %41 = vector.extract_strided_slice %27 {offsets = [0, 0, 5], sizes = [4, 17, 17], strides = [1, 1, 1]} : vector<4x17x24xf32> to vector<4x17x17xf32>
    %42 = arith.subf %40, %41 : vector<4x17x17xf32>
    %cst_8 = arith.constant 0.555570245 : f32
    %43 = vector.broadcast %cst_8 : f32 to vector<4x17x17xf32>
    %44 = arith.mulf %43, %42 : vector<4x17x17xf32>
    %45 = arith.addf %39, %44 : vector<4x17x17xf32>
    %46 = vector.extract_strided_slice %27 {offsets = [0, 0, 3], sizes = [4, 17, 17], strides = [1, 1, 1]} : vector<4x17x24xf32> to vector<4x17x17xf32>
    %47 = vector.extract_strided_slice %27 {offsets = [0, 0, 4], sizes = [4, 17, 17], strides = [1, 1, 1]} : vector<4x17x24xf32> to vector<4x17x17xf32>
    %48 = arith.subf %46, %47 : vector<4x17x17xf32>
    %cst_9 = arith.constant 0.195090324 : f32
    %49 = vector.broadcast %cst_9 : f32 to vector<4x17x17xf32>
    %50 = arith.mulf %49, %48 : vector<4x17x17xf32>
    %51 = arith.addf %45, %50 : vector<4x17x17xf32>
    %52 = vector.extract_strided_slice %0 {offsets = [0, 2, 0], sizes = [4, 17, 24], strides = [1, 1, 1]} : vector<4x24x24xf32> to vector<4x17x24xf32>
    %53 = vector.extract_strided_slice %52 {offsets = [0, 0, 0], sizes = [4, 17, 17], strides = [1, 1, 1]} : vector<4x17x24xf32> to vector<4x17x17xf32>
    %54 = vector.extract_strided_slice %52 {offsets = [0, 0, 7], sizes = [4, 17, 17], strides = [1, 1, 1]} : vector<4x17x24xf32> to vector<4x17x17xf32>
    %55 = arith.addf %53, %54 : vector<4x17x17xf32>
    %cst_10 = arith.constant 0.923879504 : f32
    %56 = vector.broadcast %cst_10 : f32 to vector<4x17x17xf32>
    %57 = arith.mulf %56, %55 : vector<4x17x17xf32>
    %58 = arith.addf %51, %57 : vector<4x17x17xf32>
    %59 = vector.extract_strided_slice %52 {offsets = [0, 0, 1], sizes = [4, 17, 17], strides = [1, 1, 1]} : vector<4x17x24xf32> to vector<4x17x17xf32>
    %60 = vector.extract_strided_slice %52 {offsets = [0, 0, 6], sizes = [4, 17, 17], strides = [1, 1, 1]} : vector<4x17x24xf32> to vector<4x17x17xf32>
    %61 = arith.addf %59, %60 : vector<4x17x17xf32>
    %cst_11 = arith.constant 0.382683426 : f32
    %62 = vector.broadcast %cst_11 : f32 to vector<4x17x17xf32>
    %63 = arith.mulf %62, %61 : vector<4x17x17xf32>
    %64 = arith.addf %58, %63 : vector<4x17x17xf32>
    %65 = vector.extract_strided_slice %52 {offsets = [0, 0, 2], sizes = [4, 17, 17], strides = [1, 1, 1]} : vector<4x17x24xf32> to vector<4x17x17xf32>
    %66 = vector.extract_strided_slice %52 {offsets = [0, 0, 5], sizes = [4, 17, 17], strides = [1, 1, 1]} : vector<4x17x24xf32> to vector<4x17x17xf32>
    %67 = arith.addf %65, %66 : vector<4x17x17xf32>
    %cst_12 = arith.constant -0.382683426 : f32
    %68 = vector.broadcast %cst_12 : f32 to vector<4x17x17xf32>
    %69 = arith.mulf %68, %67 : vector<4x17x17xf32>
    %70 = arith.addf %64, %69 : vector<4x17x17xf32>
    %71 = vector.extract_strided_slice %52 {offsets = [0, 0, 3], sizes = [4, 17, 17], strides = [1, 1, 1]} : vector<4x17x24xf32> to vector<4x17x17xf32>
    %72 = vector.extract_strided_slice %52 {offsets = [0, 0, 4], sizes = [4, 17, 17], strides = [1, 1, 1]} : vector<4x17x24xf32> to vector<4x17x17xf32>
    %73 = arith.addf %71, %72 : vector<4x17x17xf32>
    %cst_13 = arith.constant -0.923879504 : f32
    %74 = vector.broadcast %cst_13 : f32 to vector<4x17x17xf32>
    %75 = arith.mulf %74, %73 : vector<4x17x17xf32>
    %76 = arith.addf %70, %75 : vector<4x17x17xf32>
    %77 = vector.extract_strided_slice %0 {offsets = [0, 3, 0], sizes = [4, 17, 24], strides = [1, 1, 1]} : vector<4x24x24xf32> to vector<4x17x24xf32>
    %78 = vector.extract_strided_slice %77 {offsets = [0, 0, 0], sizes = [4, 17, 17], strides = [1, 1, 1]} : vector<4x17x24xf32> to vector<4x17x17xf32>
    %79 = vector.extract_strided_slice %77 {offsets = [0, 0, 7], sizes = [4, 17, 17], strides = [1, 1, 1]} : vector<4x17x24xf32> to vector<4x17x17xf32>
    %80 = arith.subf %78, %79 : vector<4x17x17xf32>
    %cst_14 = arith.constant 0.831469595 : f32
    %81 = vector.broadcast %cst_14 : f32 to vector<4x17x17xf32>
    %82 = arith.mulf %81, %80 : vector<4x17x17xf32>
    %83 = arith.addf %76, %82 : vector<4x17x17xf32>
    %84 = vector.extract_strided_slice %77 {offsets = [0, 0, 1], sizes = [4, 17, 17], strides = [1, 1, 1]} : vector<4x17x24xf32> to vector<4x17x17xf32>
    %85 = vector.extract_strided_slice %77 {offsets = [0, 0, 6], sizes = [4, 17, 17], strides = [1, 1, 1]} : vector<4x17x24xf32> to vector<4x17x17xf32>
    %86 = arith.subf %84, %85 : vector<4x17x17xf32>
    %cst_15 = arith.constant -0.195090324 : f32
    %87 = vector.broadcast %cst_15 : f32 to vector<4x17x17xf32>
    %88 = arith.mulf %87, %86 : vector<4x17x17xf32>
    %89 = arith.addf %83, %88 : vector<4x17x17xf32>
    %90 = vector.extract_strided_slice %77 {offsets = [0, 0, 2], sizes = [4, 17, 17], strides = [1, 1, 1]} : vector<4x17x24xf32> to vector<4x17x17xf32>
    %91 = vector.extract_strided_slice %77 {offsets = [0, 0, 5], sizes = [4, 17, 17], strides = [1, 1, 1]} : vector<4x17x24xf32> to vector<4x17x17xf32>
    %92 = arith.subf %90, %91 : vector<4x17x17xf32>
    %cst_16 = arith.constant -0.98078525 : f32
    %93 = vector.broadcast %cst_16 : f32 to vector<4x17x17xf32>
    %94 = arith.mulf %93, %92 : vector<4x17x17xf32>
    %95 = arith.addf %89, %94 : vector<4x17x17xf32>
    %96 = vector.extract_strided_slice %77 {offsets = [0, 0, 3], sizes = [4, 17, 17], strides = [1, 1, 1]} : vector<4x17x24xf32> to vector<4x17x17xf32>
    %97 = vector.extract_strided_slice %77 {offsets = [0, 0, 4], sizes = [4, 17, 17], strides = [1, 1, 1]} : vector<4x17x24xf32> to vector<4x17x17xf32>
    %98 = arith.subf %96, %97 : vector<4x17x17xf32>
    %cst_17 = arith.constant -0.555570245 : f32
    %99 = vector.broadcast %cst_17 : f32 to vector<4x17x17xf32>
    %100 = arith.mulf %99, %98 : vector<4x17x17xf32>
    %101 = arith.addf %95, %100 : vector<4x17x17xf32>
    %102 = vector.extract_strided_slice %0 {offsets = [0, 4, 0], sizes = [4, 17, 24], strides = [1, 1, 1]} : vector<4x24x24xf32> to vector<4x17x24xf32>
    %103 = vector.extract_strided_slice %102 {offsets = [0, 0, 0], sizes = [4, 17, 17], strides = [1, 1, 1]} : vector<4x17x24xf32> to vector<4x17x17xf32>
    %104 = vector.extract_strided_slice %102 {offsets = [0, 0, 7], sizes = [4, 17, 17], strides = [1, 1, 1]} : vector<4x17x24xf32> to vector<4x17x17xf32>
    %105 = arith.addf %103, %104 : vector<4x17x17xf32>
    %cst_18 = arith.constant 0.707106769 : f32
    %106 = vector.broadcast %cst_18 : f32 to vector<4x17x17xf32>
    %107 = arith.mulf %106, %105 : vector<4x17x17xf32>
    %108 = arith.addf %101, %107 : vector<4x17x17xf32>
    %109 = vector.extract_strided_slice %102 {offsets = [0, 0, 1], sizes = [4, 17, 17], strides = [1, 1, 1]} : vector<4x17x24xf32> to vector<4x17x17xf32>
    %110 = vector.extract_strided_slice %102 {offsets = [0, 0, 6], sizes = [4, 17, 17], strides = [1, 1, 1]} : vector<4x17x24xf32> to vector<4x17x17xf32>
    %111 = arith.addf %109, %110 : vector<4x17x17xf32>
    %cst_19 = arith.constant -0.707106769 : f32
    %112 = vector.broadcast %cst_19 : f32 to vector<4x17x17xf32>
    %113 = arith.mulf %112, %111 : vector<4x17x17xf32>
    %114 = arith.addf %108, %113 : vector<4x17x17xf32>
    %115 = vector.extract_strided_slice %102 {offsets = [0, 0, 2], sizes = [4, 17, 17], strides = [1, 1, 1]} : vector<4x17x24xf32> to vector<4x17x17xf32>
    %116 = vector.extract_strided_slice %102 {offsets = [0, 0, 5], sizes = [4, 17, 17], strides = [1, 1, 1]} : vector<4x17x24xf32> to vector<4x17x17xf32>
    %117 = arith.addf %115, %116 : vector<4x17x17xf32>
    %cst_20 = arith.constant -0.707106769 : f32
    %118 = vector.broadcast %cst_20 : f32 to vector<4x17x17xf32>
    %119 = arith.mulf %118, %117 : vector<4x17x17xf32>
    %120 = arith.addf %114, %119 : vector<4x17x17xf32>
    %121 = vector.extract_strided_slice %102 {offsets = [0, 0, 3], sizes = [4, 17, 17], strides = [1, 1, 1]} : vector<4x17x24xf32> to vector<4x17x17xf32>
    %122 = vector.extract_strided_slice %102 {offsets = [0, 0, 4], sizes = [4, 17, 17], strides = [1, 1, 1]} : vector<4x17x24xf32> to vector<4x17x17xf32>
    %123 = arith.addf %121, %122 : vector<4x17x17xf32>
    %cst_21 = arith.constant 0.707106769 : f32
    %124 = vector.broadcast %cst_21 : f32 to vector<4x17x17xf32>
    %125 = arith.mulf %124, %123 : vector<4x17x17xf32>
    %126 = arith.addf %120, %125 : vector<4x17x17xf32>
    %127 = vector.extract_strided_slice %0 {offsets = [0, 5, 0], sizes = [4, 17, 24], strides = [1, 1, 1]} : vector<4x24x24xf32> to vector<4x17x24xf32>
    %128 = vector.extract_strided_slice %127 {offsets = [0, 0, 0], sizes = [4, 17, 17], strides = [1, 1, 1]} : vector<4x17x24xf32> to vector<4x17x17xf32>
    %129 = vector.extract_strided_slice %127 {offsets = [0, 0, 7], sizes = [4, 17, 17], strides = [1, 1, 1]} : vector<4x17x24xf32> to vector<4x17x17xf32>
    %130 = arith.subf %128, %129 : vector<4x17x17xf32>
    %cst_22 = arith.constant 0.555570245 : f32
    %131 = vector.broadcast %cst_22 : f32 to vector<4x17x17xf32>
    %132 = arith.mulf %131, %130 : vector<4x17x17xf32>
    %133 = arith.addf %126, %132 : vector<4x17x17xf32>
    %134 = vector.extract_strided_slice %127 {offsets = [0, 0, 1], sizes = [4, 17, 17], strides = [1, 1, 1]} : vector<4x17x24xf32> to vector<4x17x17xf32>
    %135 = vector.extract_strided_slice %127 {offsets = [0, 0, 6], sizes = [4, 17, 17], strides = [1, 1, 1]} : vector<4x17x24xf32> to vector<4x17x17xf32>
    %136 = arith.subf %134, %135 : vector<4x17x17xf32>
    %cst_23 = arith.constant -0.98078525 : f32
    %137 = vector.broadcast %cst_23 : f32 to vector<4x17x17xf32>
    %138 = arith.mulf %137, %136 : vector<4x17x17xf32>
    %139 = arith.addf %133, %138 : vector<4x17x17xf32>
    %140 = vector.extract_strided_slice %127 {offsets = [0, 0, 2], sizes = [4, 17, 17], strides = [1, 1, 1]} : vector<4x17x24xf32> to vector<4x17x17xf32>
    %141 = vector.extract_strided_slice %127 {offsets = [0, 0, 5], sizes = [4, 17, 17], strides = [1, 1, 1]} : vector<4x17x24xf32> to vector<4x17x17xf32>
    %142 = arith.subf %140, %141 : vector<4x17x17xf32>
    %cst_24 = arith.constant 0.195090324 : f32
    %143 = vector.broadcast %cst_24 : f32 to vector<4x17x17xf32>
    %144 = arith.mulf %143, %142 : vector<4x17x17xf32>
    %145 = arith.addf %139, %144 : vector<4x17x17xf32>
    %146 = vector.extract_strided_slice %127 {offsets = [0, 0, 3], sizes = [4, 17, 17], strides = [1, 1, 1]} : vector<4x17x24xf32> to vector<4x17x17xf32>
    %147 = vector.extract_strided_slice %127 {offsets = [0, 0, 4], sizes = [4, 17, 17], strides = [1, 1, 1]} : vector<4x17x24xf32> to vector<4x17x17xf32>
    %148 = arith.subf %146, %147 : vector<4x17x17xf32>
    %cst_25 = arith.constant 0.831469595 : f32
    %149 = vector.broadcast %cst_25 : f32 to vector<4x17x17xf32>
    %150 = arith.mulf %149, %148 : vector<4x17x17xf32>
    %151 = arith.addf %145, %150 : vector<4x17x17xf32>
    %152 = vector.extract_strided_slice %0 {offsets = [0, 6, 0], sizes = [4, 17, 24], strides = [1, 1, 1]} : vector<4x24x24xf32> to vector<4x17x24xf32>
    %153 = vector.extract_strided_slice %152 {offsets = [0, 0, 0], sizes = [4, 17, 17], strides = [1, 1, 1]} : vector<4x17x24xf32> to vector<4x17x17xf32>
    %154 = vector.extract_strided_slice %152 {offsets = [0, 0, 7], sizes = [4, 17, 17], strides = [1, 1, 1]} : vector<4x17x24xf32> to vector<4x17x17xf32>
    %155 = arith.addf %153, %154 : vector<4x17x17xf32>
    %cst_26 = arith.constant 0.382683426 : f32
    %156 = vector.broadcast %cst_26 : f32 to vector<4x17x17xf32>
    %157 = arith.mulf %156, %155 : vector<4x17x17xf32>
    %158 = arith.addf %151, %157 : vector<4x17x17xf32>
    %159 = vector.extract_strided_slice %152 {offsets = [0, 0, 1], sizes = [4, 17, 17], strides = [1, 1, 1]} : vector<4x17x24xf32> to vector<4x17x17xf32>
    %160 = vector.extract_strided_slice %152 {offsets = [0, 0, 6], sizes = [4, 17, 17], strides = [1, 1, 1]} : vector<4x17x24xf32> to vector<4x17x17xf32>
    %161 = arith.addf %159, %160 : vector<4x17x17xf32>
    %cst_27 = arith.constant -0.923879504 : f32
    %162 = vector.broadcast %cst_27 : f32 to vector<4x17x17xf32>
    %163 = arith.mulf %162, %161 : vector<4x17x17xf32>
    %164 = arith.addf %158, %163 : vector<4x17x17xf32>
    %165 = vector.extract_strided_slice %152 {offsets = [0, 0, 2], sizes = [4, 17, 17], strides = [1, 1, 1]} : vector<4x17x24xf32> to vector<4x17x17xf32>
    %166 = vector.extract_strided_slice %152 {offsets = [0, 0, 5], sizes = [4, 17, 17], strides = [1, 1, 1]} : vector<4x17x24xf32> to vector<4x17x17xf32>
    %167 = arith.addf %165, %166 : vector<4x17x17xf32>
    %cst_28 = arith.constant 0.923879504 : f32
    %168 = vector.broadcast %cst_28 : f32 to vector<4x17x17xf32>
    %169 = arith.mulf %168, %167 : vector<4x17x17xf32>
    %170 = arith.addf %164, %169 : vector<4x17x17xf32>
    %171 = vector.extract_strided_slice %152 {offsets = [0, 0, 3], sizes = [4, 17, 17], strides = [1, 1, 1]} : vector<4x17x24xf32> to vector<4x17x17xf32>
    %172 = vector.extract_strided_slice %152 {offsets = [0, 0, 4], sizes = [4, 17, 17], strides = [1, 1, 1]} : vector<4x17x24xf32> to vector<4x17x17xf32>
    %173 = arith.addf %171, %172 : vector<4x17x17xf32>
    %cst_29 = arith.constant -0.382683426 : f32
    %174 = vector.broadcast %cst_29 : f32 to vector<4x17x17xf32>
    %175 = arith.mulf %174, %173 : vector<4x17x17xf32>
    %176 = arith.addf %170, %175 : vector<4x17x17xf32>
    %177 = vector.extract_strided_slice %0 {offsets = [0, 7, 0], sizes = [4, 17, 24], strides = [1, 1, 1]} : vector<4x24x24xf32> to vector<4x17x24xf32>
    %178 = vector.extract_strided_slice %177 {offsets = [0, 0, 0], sizes = [4, 17, 17], strides = [1, 1, 1]} : vector<4x17x24xf32> to vector<4x17x17xf32>
    %179 = vector.extract_strided_slice %177 {offsets = [0, 0, 7], sizes = [4, 17, 17], strides = [1, 1, 1]} : vector<4x17x24xf32> to vector<4x17x17xf32>
    %180 = arith.subf %178, %179 : vector<4x17x17xf32>
    %cst_30 = arith.constant 0.195090324 : f32
    %181 = vector.broadcast %cst_30 : f32 to vector<4x17x17xf32>
    %182 = arith.mulf %181, %180 : vector<4x17x17xf32>
    %183 = arith.addf %176, %182 : vector<4x17x17xf32>
    %184 = vector.extract_strided_slice %177 {offsets = [0, 0, 1], sizes = [4, 17, 17], strides = [1, 1, 1]} : vector<4x17x24xf32> to vector<4x17x17xf32>
    %185 = vector.extract_strided_slice %177 {offsets = [0, 0, 6], sizes = [4, 17, 17], strides = [1, 1, 1]} : vector<4x17x24xf32> to vector<4x17x17xf32>
    %186 = arith.subf %184, %185 : vector<4x17x17xf32>
    %cst_31 = arith.constant -0.555570245 : f32
    %187 = vector.broadcast %cst_31 : f32 to vector<4x17x17xf32>
    %188 = arith.mulf %187, %186 : vector<4x17x17xf32>
    %189 = arith.addf %183, %188 : vector<4x17x17xf32>
    %190 = vector.extract_strided_slice %177 {offsets = [0, 0, 2], sizes = [4, 17, 17], strides = [1, 1, 1]} : vector<4x17x24xf32> to vector<4x17x17xf32>
    %191 = vector.extract_strided_slice %177 {offsets = [0, 0, 5], sizes = [4, 17, 17], strides = [1, 1, 1]} : vector<4x17x24xf32> to vector<4x17x17xf32>
    %192 = arith.subf %190, %191 : vector<4x17x17xf32>
    %cst_32 = arith.constant 0.831469595 : f32
    %193 = vector.broadcast %cst_32 : f32 to vector<4x17x17xf32>
    %194 = arith.mulf %193, %192 : vector<4x17x17xf32>
    %195 = arith.addf %189, %194 : vector<4x17x17xf32>
    %196 = vector.extract_strided_slice %177 {offsets = [0, 0, 3], sizes = [4, 17, 17], strides = [1, 1, 1]} : vector<4x17x24xf32> to vector<4x17x17xf32>
    %197 = vector.extract_strided_slice %177 {offsets = [0, 0, 4], sizes = [4, 17, 17], strides = [1, 1, 1]} : vector<4x17x24xf32> to vector<4x17x17xf32>
    %198 = arith.subf %196, %197 : vector<4x17x17xf32>
    %cst_33 = arith.constant -0.98078525 : f32
    %199 = vector.broadcast %cst_33 : f32 to vector<4x17x17xf32>
    %200 = arith.mulf %199, %198 : vector<4x17x17xf32>
    %201 = arith.addf %195, %200 : vector<4x17x17xf32>
    %c0_34 = arith.constant 0 : index
    %c0_35 = arith.constant 0 : index
    %c0_36 = arith.constant 0 : index
    %202 = vector.load %arg2[%c0_34, %c0_35, %c0_36] : memref<4x17x17xf32, #tpu.memory_space<vmem>>, vector<4x17x17xf32>
    tpu.vector_store %arg2[%c0_34, %c0_35, %c0_36], %201 {strides = array<i32>} : memref<4x17x17xf32, #tpu.memory_space<vmem>>, vector<4x17x17xf32>,
    return
  }
  func.func @transform_0(%arg0: i32) -> (i32, i32, i32) {
    %c0_i32 = arith.constant 0 : i32
    %c0_i32_0 = arith.constant 0 : i32
    %c0_i32_1 = arith.constant 0 : i32
    return %arg0, %c0_i32, %c0_i32_0 : i32, i32, i32
  }
  func.func @transform_1(%arg0: i32) -> (i32, i32, i32) {
    %c0_i32 = arith.constant 0 : i32
    %c0_i32_0 = arith.constant 0 : i32
    %c0_i32_1 = arith.constant 0 : i32
    return %arg0, %c0_i32, %c0_i32_0 : i32, i32, i32
  }
}

</mosaic_0001>

<llo_original>
// kernel: tpu_custom_call.1
$region0: #{tpu_custom_call.1}
  #allocation0 [shape = 'u32[]', space=smem, size = 0x4, offset = 0x4, fixed_abs, tag = 'smem constant byte address 0x4 - core index']
  #allocation1 [shape = 'u32[144,128]{1,0:T(1,128)}', space=vmem, size = 0x12000, scoped, tag = 'internal scratch']
  %s0 = inlined_call_operand.hbm [shape: f32[8,24,24], index: 0, kind: input, shape index: {}]
  %s1 = inlined_call_operand.vmem [shape: f32[8,17,17], index: 1, kind: output, shape index: {}]
  %s2 = sld [smem:[#allocation0]]
  $region41: #{tpu_custom_call.1} parent=0
    _
  %s4 = ssub.s32 1, %s2
  %s5 = scalar_select 0, %s4, %s2
  $region1: #{tpu_custom_call.1} parent=0
    #allocation2 [shape = 'u8[98304]{0}', space=vmem, size = 0x18000, scoped, tag = 'input window, operand 0']
    #allocation3 [shape = 's32[2]{0}', space=sflag, size = 0x8, scoped, tag = 'scoped memory for tpu_custom_call.1']
    %6 = vsyncpa [#allocation3], 0
    %s7 = scalar_lea.sflag [#allocation3], 1
    %8 = vsyncpa %s7, 0
    loop: start=0, step=1, limit=4
    $region2: #{tpu_custom_call.1} parent=1 // loop_pre_header
      _
    $region3: #{tpu_custom_call.1} parent=1 // loop_header
      %s10 = sphi 0, %s14
      %p11 = scmp.ge.s32.totalorder %s10, 4
      %s20 = sphi 0, %s22
      %s23 = sphi 0, %s20
      %s24 = sphi 0, %s23
      %s40 = sphi 0, %s24
      %s46 = sphi 0, %s48
      %s49 = sphi 0, %s46
      %s50 = sphi 0, %s49
      %s66 = sphi 0, %s50
    $region4: #{tpu_custom_call.1} parent=1 // loop_header_branch
      %13 = sbr.rel (%p11) target = $region8
    $region5: #{tpu_custom_call.1} parent=1 // loop_body
      %s15 = ssub.s32 %s10, 1
      %s16 = ssub.s32 %s10, 2
      %s17 = sadd.s32 %s10, 1
      %s18 = ssub.s32 %s10, %s17
      %p19 = scmp.eq.s32.totalorder %s18, 0
      %s21 = sadd.s32 %s20, 1
      %s22 = scalar_select %p19, %s20, %s21
      %p25 = pneg %p19
      %p26 = scmp.eq.s32.totalorder %s10, 1
      %p27 = por %p25, %p26
      %p28 = scmp.ne.s32.totalorder %s20, %s23
      %p29 = scmp.eq.s32.totalorder %s10, 0
      %p30 = por %p28, %p29
      %p31 = scmp.ne.s32.totalorder %s20, %s23
      %p32 = scmp.eq.s32.totalorder %s15, 1
      %p33 = por %p31, %p32
      %p34 = scmp.ne.s32.totalorder %s23, %s24
      %p35 = scmp.eq.s32.totalorder %s15, 0
      %p36 = por %p34, %p35
      %p37 = scmp.ne.s32.totalorder %s23, %s24
      %p38 = scmp.eq.s32.totalorder %s16, 1
      %p39 = por %p37, %p38
      %p41 = scmp.ne.s32.totalorder %s24, %s40
      %p42 = scmp.eq.s32.totalorder %s16, 0
      %p43 = por %p41, %p42
      %s44 = ssub.s32 %s10, %s17
      %p45 = scmp.eq.s32.totalorder %s44, 0
      %s47 = sadd.s32 %s46, 1
      %s48 = scalar_select %p45, %s46, %s47
      %p51 = pneg %p45
      %p52 = scmp.eq.s32.totalorder %s10, 1
      %p53 = por %p51, %p52
      %p54 = scmp.ne.s32.totalorder %s46, %s49
      %p55 = scmp.eq.s32.totalorder %s10, 0
      %p56 = por %p54, %p55
      %p57 = scmp.ne.s32.totalorder %s46, %s49
      %p58 = scmp.eq.s32.totalorder %s15, 1
      %p59 = por %p57, %p58
      %p60 = scmp.ne.s32.totalorder %s49, %s50
      %p61 = scmp.eq.s32.totalorder %s15, 0
      %p62 = por %p60, %p61
      %p63 = scmp.ne.s32.totalorder %s49, %s50
      %p64 = scmp.eq.s32.totalorder %s16, 1
      %p65 = por %p63, %p64
      %p67 = scmp.ne.s32.totalorder %s50, %s66
      %p68 = scmp.eq.s32.totalorder %s16, 0
      %p69 = por %p67, %p68
      %p70 = scmp.le.s32.totalorder 1, %s10
      %p71 = scmp.lt.s32.totalorder %s10, 3
      %p72 = pnand %p70, %p71
      %p73 = pneg %p72
      // Predicated region
      $region9: #{tpu_custom_call.1} parent=5 // pred_check
        _
      $region10: #{tpu_custom_call.1} parent=5 // pred_check_branch
        %75 = sbr.rel (%p72) target = $region12
      $region11: #{tpu_custom_call.1} parent=5 // pred_region
        %s76 = ssub.s32 %s10, 1
      $region12: #{tpu_custom_call.1} parent=5 // pred_fallthru
        _
      %p77 = scmp.lt.s32.totalorder %s10, 2
      // Predicated region
      $region13: #{tpu_custom_call.1} parent=5 // pred_check
        %p78 = pneg %p77
      $region14: #{tpu_custom_call.1} parent=5 // pred_check_branch
        %80 = sbr.rel (%p78) target = $region16
      $region15: #{tpu_custom_call.1} parent=5 // pred_region
        // Predicated region
        $region17: #{tpu_custom_call.1} parent=15 // pred_check
          %p81 = pneg %p30
        $region18: #{tpu_custom_call.1} parent=15 // pred_check_branch
          %83 = sbr.rel (%p81) target = $region20
        $region19: #{tpu_custom_call.1} parent=15 // pred_region
          %s84 = sand.u32 %s20, 1
          %s85 = scalar_lea.sflag [#allocation3], %s84
          %s86 = sand.u32 %s20, 1
          %s87 = smul.addr %s86, 96
          %s88 = scalar_lea.vmem [#allocation2], %s87
          %s89 = smul.u32 4, %s10
          %s91 = ssub.s32 1536, 1536
          %92 = vsyncadd %s85, %s91
          %s93 = smul.addr %s89, 3
          %s94 = smul.addr %s93, 128
          %s95 = scalar_lea.hbm %s0, %s94
          %s96 = sshll.u32 %s88, 4
          %s97 = int_to_ptr.vmem [resolvable:$true] %s96
          %102 = dma.hbm_to_vmem [thread:$0]  %s95, 1536, %s97, %s85, 128, 128, 8
        $region20: #{tpu_custom_call.1} parent=15 // pred_fallthru
          _
      $region16: #{tpu_custom_call.1} parent=5 // pred_fallthru
        _
      %p103 = scmp.le.s32.totalorder 1, %s10
      %p104 = scmp.lt.s32.totalorder %s10, 3
      %p105 = pnand %p103, %p104
      %p106 = pneg %p105
      // Predicated region
      $region21: #{tpu_custom_call.1} parent=5 // pred_check
        _
      $region22: #{tpu_custom_call.1} parent=5 // pred_check_branch
        %108 = sbr.rel (%p105) target = $region24
      $region23: #{tpu_custom_call.1} parent=5 // pred_region
        %s109 = ssub.s32 %s10, 1
        %s110 = sand.u32 %s23, 1
        %s111 = scalar_lea.sflag [#allocation3], %s110
        %s112 = sand.u32 %s23, 1
        %s113 = smul.addr %s112, 96
        %s114 = scalar_lea.vmem [#allocation2], %s113
        // Predicated region
        $region25: #{tpu_custom_call.1} parent=23 // pred_check
          %p115 = pneg %p36
        $region26: #{tpu_custom_call.1} parent=23 // pred_check_branch
          %117 = sbr.rel (%p115) target = $region28
        $region27: #{tpu_custom_call.1} parent=23 // pred_region
          %118 = dma.done %s111, 1536
        $region28: #{tpu_custom_call.1} parent=23 // pred_fallthru
          _
        %s119 = sand.u32 %s23, 1
        %s120 = scalar_lea.sflag [#allocation3], %s119
        %s121 = sand.u32 %s23, 1
        %s122 = smul.addr %s121, 96
        %s123 = scalar_lea.vmem [#allocation2], %s122
        %p124 = pneg %p36
        %p125 = pneg %p33
        %p126 = pneg %p62
        %p127 = pneg %p59
        %s128 = smul.u32 4, %s15
        %p129 = scmp.lt.s32.totalorder %s128, 7
        %s130 = scalar_select %p129, %s128, 7
        %s131 = smul.addr %s130, 3
        %s132 = smul.addr %s131, 8
        %s133 = scalar_lea.vmem %s1, %s132
        %s134 = smul.u32 4, %s15
        %s135 = smul.u32 4, %s15
        %p136 = scmp.lt.s32.totalorder %s135, 7
        %s137 = scalar_select %p136, %s135, 7
        %s138 = smul.addr %s137, 3
        %s139 = smul.addr %s138, 8
        %s140 = scalar_lea.vmem %s1, %s139
        %s141 = smul.u32 4, %s15
        %v142 = vld [vmem:[%s114] sm:$0xff]
        %v143 = vld [vmem:[%s114 + $0x8] sm:$0xff]
        %v144 = vld [vmem:[%s114 + $0x10] sm:$0xff]
        %v145 = vld [vmem:[%s114 + $0x18] sm:$0xff]
        %v146 = vld [vmem:[%s114 + $0x20] sm:$0xff]
        %v147 = vld [vmem:[%s114 + $0x28] sm:$0xff]
        %v148 = vld [vmem:[%s114 + $0x30] sm:$0xff]
        %v149 = vld [vmem:[%s114 + $0x38] sm:$0xff]
        %v150 = vld [vmem:[%s114 + $0x40] sm:$0xff]
        %v151 = vld [vmem:[%s114 + $0x48] sm:$0xff]
        %v152 = vld [vmem:[%s114 + $0x50] sm:$0xff]
        %v153 = vld [vmem:[%s114 + $0x58] sm:$0xff]
        %166 = vrot.lane.b32.xlu0 %v142, 121
        %v167 = vpop.permute.xlu0 %166
        %168 = vrot.lane.b32.xlu0 %v143, 121
        %v169 = vpop.permute.xlu0 %168
        %170 = vrot.lane.b32.xlu0 %v144, 121
        %v171 = vpop.permute.xlu0 %170
        %172 = vrot.lane.b32.xlu0 %v145, 121
        %v173 = vpop.permute.xlu0 %172
        %174 = vrot.lane.b32.xlu0 %v146, 121
        %v175 = vpop.permute.xlu0 %174
        %176 = vrot.lane.b32.xlu0 %v147, 121
        %v177 = vpop.permute.xlu0 %176
        %178 = vrot.lane.b32.xlu0 %v148, 121
        %v179 = vpop.permute.xlu0 %178
        %180 = vrot.lane.b32.xlu0 %v149, 121
        %v181 = vpop.permute.xlu0 %180
        %182 = vrot.lane.b32.xlu0 %v150, 121
        %v183 = vpop.permute.xlu0 %182
        %184 = vrot.lane.b32.xlu0 %v151, 121
        %v185 = vpop.permute.xlu0 %184
        %186 = vrot.lane.b32.xlu0 %v152, 121
        %v187 = vpop.permute.xlu0 %186
        %188 = vrot.lane.b32.xlu0 %v153, 121
        %v189 = vpop.permute.xlu0 %188
        %v202 = vadd.f32 %v142, %v167
        %v203 = vadd.f32 %v143, %v169
        %v204 = vadd.f32 %v144, %v171
        %v205 = vadd.f32 %v145, %v173
        %v206 = vadd.f32 %v146, %v175
        %v207 = vadd.f32 %v147, %v177
        %v208 = vadd.f32 %v148, %v179
        %v209 = vadd.f32 %v149, %v181
        %v210 = vadd.f32 %v150, %v183
        %v211 = vadd.f32 %v151, %v185
        %v212 = vadd.f32 %v152, %v187
        %v213 = vadd.f32 %v153, %v189
        %v214 = vmul.f32 %v202, 0.70710677
        %v215 = vmul.f32 %v203, 0.70710677
        %v216 = vmul.f32 %v204, 0.70710677
        %v217 = vmul.f32 %v205, 0.70710677
        %v218 = vmul.f32 %v206, 0.70710677
        %v219 = vmul.f32 %v207, 0.70710677
        %v220 = vmul.f32 %v208, 0.70710677
        %v221 = vmul.f32 %v209, 0.70710677
        %v222 = vmul.f32 %v210, 0.70710677
        %v223 = vmul.f32 %v211, 0.70710677
        %v224 = vmul.f32 %v212, 0.70710677
        %v225 = vmul.f32 %v213, 0.70710677
        %v226 = vadd.f32 %v214, 0.0
        %v227 = vadd.f32 %v215, 0.0
        %v228 = vadd.f32 %v216, 0.0
        %v229 = vadd.f32 %v217, 0.0
        %v230 = vadd.f32 %v218, 0.0
        %v231 = vadd.f32 %v219, 0.0
        %v232 = vadd.f32 %v220, 0.0
        %v233 = vadd.f32 %v221, 0.0
        %v234 = vadd.f32 %v222, 0.0
        %v235 = vadd.f32 %v223, 0.0
        %v236 = vadd.f32 %v224, 0.0
        %v237 = vadd.f32 %v225, 0.0
        %238 = vrot.lane.b32.xlu0 %v142, 123
        %v239 = vpop.permute.xlu0 %238
        %240 = vrot.lane.b32.xlu0 %v143, 123
        %v241 = vpop.permute.xlu0 %240
        %242 = vrot.lane.b32.xlu0 %v144, 123
        %v243 = vpop.permute.xlu0 %242
        %244 = vrot.lane.b32.xlu0 %v145, 123
        %v245 = vpop.permute.xlu0 %244
        %246 = vrot.lane.b32.xlu0 %v146, 123
        %v247 = vpop.permute.xlu0 %246
        %248 = vrot.lane.b32.xlu0 %v147, 123
        %v249 = vpop.permute.xlu0 %248
        %250 = vrot.lane.b32.xlu0 %v148, 123
        %v251 = vpop.permute.xlu0 %250
        %252 = vrot.lane.b32.xlu0 %v149, 123
        %v253 = vpop.permute.xlu0 %252
        %254 = vrot.lane.b32.xlu0 %v150, 123
        %v255 = vpop.permute.xlu0 %254
        %256 = vrot.lane.b32.xlu0 %v151, 123
        %v257 = vpop.permute.xlu0 %256
        %258 = vrot.lane.b32.xlu0 %v152, 123
        %v259 = vpop.permute.xlu0 %258
        %260 = vrot.lane.b32.xlu0 %v153, 123
        %v261 = vpop.permute.xlu0 %260
        %v274 = vadd.f32 %v142, %v239
        %v275 = vadd.f32 %v143, %v241
        %v276 = vadd.f32 %v144, %v243
        %v277 = vadd.f32 %v145, %v245
        %v278 = vadd.f32 %v146, %v247
        %v279 = vadd.f32 %v147, %v249
        %v280 = vadd.f32 %v148, %v251
        %v281 = vadd.f32 %v149, %v253
        %v282 = vadd.f32 %v150, %v255
        %v283 = vadd.f32 %v151, %v257
        %v284 = vadd.f32 %v152, %v259
        %v285 = vadd.f32 %v153, %v261
        %v286 = vmul.f32 %v274, 0.70710677
        %v287 = vmul.f32 %v275, 0.70710677
        %v288 = vmul.f32 %v276, 0.70710677
        %v289 = vmul.f32 %v277, 0.70710677
        %v290 = vmul.f32 %v278, 0.70710677
        %v291 = vmul.f32 %v279, 0.70710677
        %v292 = vmul.f32 %v280, 0.70710677
        %v293 = vmul.f32 %v281, 0.70710677
        %v294 = vmul.f32 %v282, 0.70710677
        %v295 = vmul.f32 %v283, 0.70710677
        %v296 = vmul.f32 %v284, 0.70710677
        %v297 = vmul.f32 %v285, 0.70710677
        %310 = vrot.lane.b32.xlu0 %v286, 127
        %v311 = vpop.permute.xlu0 %310
        %312 = vrot.lane.b32.xlu0 %v287, 127
        %v313 = vpop.permute.xlu0 %312
        %314 = vrot.lane.b32.xlu0 %v288, 127
        %v315 = vpop.permute.xlu0 %314
        %316 = vrot.lane.b32.xlu0 %v289, 127
        %v317 = vpop.permute.xlu0 %316
        %318 = vrot.lane.b32.xlu0 %v290, 127
        %v319 = vpop.permute.xlu0 %318
        %320 = vrot.lane.b32.xlu0 %v291, 127
        %v321 = vpop.permute.xlu0 %320
        %322 = vrot.lane.b32.xlu0 %v292, 127
        %v323 = vpop.permute.xlu0 %322
        %324 = vrot.lane.b32.xlu0 %v293, 127
        %v325 = vpop.permute.xlu0 %324
        %326 = vrot.lane.b32.xlu0 %v294, 127
        %v327 = vpop.permute.xlu0 %326
        %328 = vrot.lane.b32.xlu0 %v295, 127
        %v329 = vpop.permute.xlu0 %328
        %330 = vrot.lane.b32.xlu0 %v296, 127
        %v331 = vpop.permute.xlu0 %330
        %332 = vrot.lane.b32.xlu0 %v297, 127
        %v333 = vpop.permute.xlu0 %332
        %v346 = vadd.f32 %v226, %v311
        %v347 = vadd.f32 %v227, %v313
        %v348 = vadd.f32 %v228, %v315
        %v349 = vadd.f32 %v229, %v317
        %v350 = vadd.f32 %v230, %v319
        %v351 = vadd.f32 %v231, %v321
        %v352 = vadd.f32 %v232, %v323
        %v353 = vadd.f32 %v233, %v325
        %v354 = vadd.f32 %v234, %v327
        %v355 = vadd.f32 %v235, %v329
        %v356 = vadd.f32 %v236, %v331
        %v357 = vadd.f32 %v237, %v333
        %358 = vrot.lane.b32.xlu0 %v142, 125
        %v359 = vpop.permute.xlu0 %358
        %360 = vrot.lane.b32.xlu0 %v143, 125
        %v361 = vpop.permute.xlu0 %360
        %362 = vrot.lane.b32.xlu0 %v144, 125
        %v363 = vpop.permute.xlu0 %362
        %364 = vrot.lane.b32.xlu0 %v145, 125
        %v365 = vpop.permute.xlu0 %364
        %366 = vrot.lane.b32.xlu0 %v146, 125
        %v367 = vpop.permute.xlu0 %366
        %368 = vrot.lane.b32.xlu0 %v147, 125
        %v369 = vpop.permute.xlu0 %368
        %370 = vrot.lane.b32.xlu0 %v148, 125
        %v371 = vpop.permute.xlu0 %370
        %372 = vrot.lane.b32.xlu0 %v149, 125
        %v373 = vpop.permute.xlu0 %372
        %374 = vrot.lane.b32.xlu0 %v150, 125
        %v375 = vpop.permute.xlu0 %374
        %376 = vrot.lane.b32.xlu0 %v151, 125
        %v377 = vpop.permute.xlu0 %376
        %378 = vrot.lane.b32.xlu0 %v152, 125
        %v379 = vpop.permute.xlu0 %378
        %380 = vrot.lane.b32.xlu0 %v153, 125
        %v381 = vpop.permute.xlu0 %380
        %v394 = vadd.f32 %v142, %v359
        %v395 = vadd.f32 %v143, %v361
        %v396 = vadd.f32 %v144, %v363
        %v397 = vadd.f32 %v145, %v365
        %v398 = vadd.f32 %v146, %v367
        %v399 = vadd.f32 %v147, %v369
        %v400 = vadd.f32 %v148, %v371
        %v401 = vadd.f32 %v149, %v373
        %v402 = vadd.f32 %v150, %v375
        %v403 = vadd.f32 %v151, %v377
        %v404 = vadd.f32 %v152, %v379
        %v405 = vadd.f32 %v153, %v381
        %v406 = vmul.f32 %v394, 0.70710677
        %v407 = vmul.f32 %v395, 0.70710677
        %v408 = vmul.f32 %v396, 0.70710677
        %v409 = vmul.f32 %v397, 0.70710677
        %v410 = vmul.f32 %v398, 0.70710677
        %v411 = vmul.f32 %v399, 0.70710677
        %v412 = vmul.f32 %v400, 0.70710677
        %v413 = vmul.f32 %v401, 0.70710677
        %v414 = vmul.f32 %v402, 0.70710677
        %v415 = vmul.f32 %v403, 0.70710677
        %v416 = vmul.f32 %v404, 0.70710677
        %v417 = vmul.f32 %v405, 0.70710677
        %430 = vrot.lane.b32.xlu0 %v406, 126
        %v431 = vpop.permute.xlu0 %430
        %432 = vrot.lane.b32.xlu0 %v407, 126
        %v433 = vpop.permute.xlu0 %432
        %434 = vrot.lane.b32.xlu0 %v408, 126
        %v435 = vpop.permute.xlu0 %434
        %436 = vrot.lane.b32.xlu0 %v409, 126
        %v437 = vpop.permute.xlu0 %436
        %438 = vrot.lane.b32.xlu0 %v410, 126
        %v439 = vpop.permute.xlu0 %438
        %440 = vrot.lane.b32.xlu0 %v411, 126
        %v441 = vpop.permute.xlu0 %440
        %442 = vrot.lane.b32.xlu0 %v412, 126
        %v443 = vpop.permute.xlu0 %442
        %444 = vrot.lane.b32.xlu0 %v413, 126
        %v445 = vpop.permute.xlu0 %444
        %446 = vrot.lane.b32.xlu0 %v414, 126
        %v447 = vpop.permute.xlu0 %446
        %448 = vrot.lane.b32.xlu0 %v415, 126
        %v449 = vpop.permute.xlu0 %448
        %450 = vrot.lane.b32.xlu0 %v416, 126
        %v451 = vpop.permute.xlu0 %450
        %452 = vrot.lane.b32.xlu0 %v417, 126
        %v453 = vpop.permute.xlu0 %452
        %v466 = vadd.f32 %v346, %v431
        %v467 = vadd.f32 %v347, %v433
        %v468 = vadd.f32 %v348, %v435
        %v469 = vadd.f32 %v349, %v437
        %v470 = vadd.f32 %v350, %v439
        %v471 = vadd.f32 %v351, %v441
        %v472 = vadd.f32 %v352, %v443
        %v473 = vadd.f32 %v353, %v445
        %v474 = vadd.f32 %v354, %v447
        %v475 = vadd.f32 %v355, %v449
        %v476 = vadd.f32 %v356, %v451
        %v477 = vadd.f32 %v357, %v453
        %478 = vrot.lane.b32.xlu0 %v142, 127
        %v479 = vpop.permute.xlu0 %478
        %480 = vrot.lane.b32.xlu0 %v143, 127
        %v481 = vpop.permute.xlu0 %480
        %482 = vrot.lane.b32.xlu0 %v144, 127
        %v483 = vpop.permute.xlu0 %482
        %484 = vrot.lane.b32.xlu0 %v145, 127
        %v485 = vpop.permute.xlu0 %484
        %486 = vrot.lane.b32.xlu0 %v146, 127
        %v487 = vpop.permute.xlu0 %486
        %488 = vrot.lane.b32.xlu0 %v147, 127
        %v489 = vpop.permute.xlu0 %488
        %490 = vrot.lane.b32.xlu0 %v148, 127
        %v491 = vpop.permute.xlu0 %490
        %492 = vrot.lane.b32.xlu0 %v149, 127
        %v493 = vpop.permute.xlu0 %492
        %494 = vrot.lane.b32.xlu0 %v150, 127
        %v495 = vpop.permute.xlu0 %494
        %496 = vrot.lane.b32.xlu0 %v151, 127
        %v497 = vpop.permute.xlu0 %496
        %498 = vrot.lane.b32.xlu0 %v152, 127
        %v499 = vpop.permute.xlu0 %498
        %500 = vrot.lane.b32.xlu0 %v153, 127
        %v501 = vpop.permute.xlu0 %500
        %v514 = vadd.f32 %v142, %v479
        %v515 = vadd.f32 %v143, %v481
        %v516 = vadd.f32 %v144, %v483
        %v517 = vadd.f32 %v145, %v485
        %v518 = vadd.f32 %v146, %v487
        %v519 = vadd.f32 %v147, %v489
        %v520 = vadd.f32 %v148, %v491
        %v521 = vadd.f32 %v149, %v493
        %v522 = vadd.f32 %v150, %v495
        %v523 = vadd.f32 %v151, %v497
        %v524 = vadd.f32 %v152, %v499
        %v525 = vadd.f32 %v153, %v501
        %v526 = vmul.f32 %v514, 0.70710677
        %v527 = vmul.f32 %v515, 0.70710677
        %v528 = vmul.f32 %v516, 0.70710677
        %v529 = vmul.f32 %v517, 0.70710677
        %v530 = vmul.f32 %v518, 0.70710677
        %v531 = vmul.f32 %v519, 0.70710677
        %v532 = vmul.f32 %v520, 0.70710677
        %v533 = vmul.f32 %v521, 0.70710677
        %v534 = vmul.f32 %v522, 0.70710677
        %v535 = vmul.f32 %v523, 0.70710677
        %v536 = vmul.f32 %v524, 0.70710677
        %v537 = vmul.f32 %v525, 0.70710677
        %550 = vrot.lane.b32.xlu0 %v526, 125
        %v551 = vpop.permute.xlu0 %550
        %552 = vrot.lane.b32.xlu0 %v527, 125
        %v553 = vpop.permute.xlu0 %552
        %554 = vrot.lane.b32.xlu0 %v528, 125
        %v555 = vpop.permute.xlu0 %554
        %556 = vrot.lane.b32.xlu0 %v529, 125
        %v557 = vpop.permute.xlu0 %556
        %558 = vrot.lane.b32.xlu0 %v530, 125
        %v559 = vpop.permute.xlu0 %558
        %560 = vrot.lane.b32.xlu0 %v531, 125
        %v561 = vpop.permute.xlu0 %560
        %562 = vrot.lane.b32.xlu0 %v532, 125
        %v563 = vpop.permute.xlu0 %562
        %564 = vrot.lane.b32.xlu0 %v533, 125
        %v565 = vpop.permute.xlu0 %564
        %566 = vrot.lane.b32.xlu0 %v534, 125
        %v567 = vpop.permute.xlu0 %566
        %568 = vrot.lane.b32.xlu0 %v535, 125
        %v569 = vpop.permute.xlu0 %568
        %570 = vrot.lane.b32.xlu0 %v536, 125
        %v571 = vpop.permute.xlu0 %570
        %572 = vrot.lane.b32.xlu0 %v537, 125
        %v573 = vpop.permute.xlu0 %572
        %v586 = vadd.f32 %v466, %v551
        %v587 = vadd.f32 %v467, %v553
        %v588 = vadd.f32 %v468, %v555
        %v589 = vadd.f32 %v469, %v557
        %v590 = vadd.f32 %v470, %v559
        %v591 = vadd.f32 %v471, %v561
        %v592 = vadd.f32 %v472, %v563
        %v593 = vadd.f32 %v473, %v565
        %v594 = vadd.f32 %v474, %v567
        %v595 = vadd.f32 %v475, %v569
        %v596 = vadd.f32 %v476, %v571
        %v597 = vadd.f32 %v477, %v573
        %v598 = vsub.f32 %v142, %v167
        %v599 = vsub.f32 %v143, %v169
        %v600 = vsub.f32 %v144, %v171
        %v601 = vsub.f32 %v145, %v173
        %v602 = vsub.f32 %v146, %v175
        %v603 = vsub.f32 %v147, %v177
        %v604 = vsub.f32 %v148, %v179
        %v605 = vsub.f32 %v149, %v181
        %v606 = vsub.f32 %v150, %v183
        %v607 = vsub.f32 %v151, %v185
        %v608 = vsub.f32 %v152, %v187
        %v609 = vsub.f32 %v153, %v189
        %v610 = vmul.f32 %v598, 0.98078525
        %v611 = vmul.f32 %v599, 0.98078525
        %v612 = vmul.f32 %v600, 0.98078525
        %v613 = vmul.f32 %v601, 0.98078525
        %v614 = vmul.f32 %v602, 0.98078525
        %v615 = vmul.f32 %v603, 0.98078525
        %v616 = vmul.f32 %v604, 0.98078525
        %v617 = vmul.f32 %v605, 0.98078525
        %v618 = vmul.f32 %v606, 0.98078525
        %v619 = vmul.f32 %v607, 0.98078525
        %v620 = vmul.f32 %v608, 0.98078525
        %v621 = vmul.f32 %v609, 0.98078525
        %vm634 = vcmask 1046528
        %v635 = vrot.slane %v610, 1
        %v636 = vrot.slane %v611, 1
        %v637 = vsel %vm634, %v635, %v636
        %v638 = vrot.slane %v612, 1
        %v639 = vsel %vm634, %v636, %v638
        %v640 = vrot.slane %v613, 1
        %v641 = vrot.slane %v614, 1
        %v642 = vsel %vm634, %v640, %v641
        %v643 = vrot.slane %v615, 1
        %v644 = vsel %vm634, %v641, %v643
        %v645 = vrot.slane %v616, 1
        %v646 = vrot.slane %v617, 1
        %v647 = vsel %vm634, %v645, %v646
        %v648 = vrot.slane %v618, 1
        %v649 = vsel %vm634, %v646, %v648
        %v650 = vrot.slane %v619, 1
        %v651 = vrot.slane %v620, 1
        %v652 = vsel %vm634, %v650, %v651
        %v653 = vrot.slane %v621, 1
        %v654 = vsel %vm634, %v651, %v653
        %v667 = vadd.f32 %v586, %v637
        %v668 = vadd.f32 %v587, %v639
        %v669 = vadd.f32 %v588, %v638
        %v670 = vadd.f32 %v589, %v642
        %v671 = vadd.f32 %v590, %v644
        %v672 = vadd.f32 %v591, %v643
        %v673 = vadd.f32 %v592, %v647
        %v674 = vadd.f32 %v593, %v649
        %v675 = vadd.f32 %v594, %v648
        %v676 = vadd.f32 %v595, %v652
        %v677 = vadd.f32 %v596, %v654
        %v678 = vadd.f32 %v597, %v653
        %v679 = vsub.f32 %v142, %v239
        %v680 = vsub.f32 %v143, %v241
        %v681 = vsub.f32 %v144, %v243
        %v682 = vsub.f32 %v145, %v245
        %v683 = vsub.f32 %v146, %v247
        %v684 = vsub.f32 %v147, %v249
        %v685 = vsub.f32 %v148, %v251
        %v686 = vsub.f32 %v149, %v253
        %v687 = vsub.f32 %v150, %v255
        %v688 = vsub.f32 %v151, %v257
        %v689 = vsub.f32 %v152, %v259
        %v690 = vsub.f32 %v153, %v261
        %v691 = vmul.f32 %v679, 0.8314696
        %v692 = vmul.f32 %v680, 0.8314696
        %v693 = vmul.f32 %v681, 0.8314696
        %v694 = vmul.f32 %v682, 0.8314696
        %v695 = vmul.f32 %v683, 0.8314696
        %v696 = vmul.f32 %v684, 0.8314696
        %v697 = vmul.f32 %v685, 0.8314696
        %v698 = vmul.f32 %v686, 0.8314696
        %v699 = vmul.f32 %v687, 0.8314696
        %v700 = vmul.f32 %v688, 0.8314696
        %v701 = vmul.f32 %v689, 0.8314696
        %v702 = vmul.f32 %v690, 0.8314696
        %v715 = vrot.slane %v691, 1
        %v716 = vrot.slane %v692, 1
        %v717 = vsel %vm634, %v715, %v716
        %v718 = vrot.slane %v693, 1
        %v719 = vsel %vm634, %v716, %v718
        %v720 = vrot.slane %v694, 1
        %v721 = vrot.slane %v695, 1
        %v722 = vsel %vm634, %v720, %v721
        %v723 = vrot.slane %v696, 1
        %v724 = vsel %vm634, %v721, %v723
        %v725 = vrot.slane %v697, 1
        %v726 = vrot.slane %v698, 1
        %v727 = vsel %vm634, %v725, %v726
        %v728 = vrot.slane %v699, 1
        %v729 = vsel %vm634, %v726, %v728
        %v730 = vrot.slane %v700, 1
        %v731 = vrot.slane %v701, 1
        %v732 = vsel %vm634, %v730, %v731
        %v733 = vrot.slane %v702, 1
        %v734 = vsel %vm634, %v731, %v733
        %735 = vrot.lane.b32.xlu0 %v717, 127
        %v736 = vpop.permute.xlu0 %735
        %737 = vrot.lane.b32.xlu0 %v719, 127
        %v738 = vpop.permute.xlu0 %737
        %739 = vrot.lane.b32.xlu0 %v718, 127
        %v740 = vpop.permute.xlu0 %739
        %741 = vrot.lane.b32.xlu0 %v722, 127
        %v742 = vpop.permute.xlu0 %741
        %743 = vrot.lane.b32.xlu0 %v724, 127
        %v744 = vpop.permute.xlu0 %743
        %745 = vrot.lane.b32.xlu0 %v723, 127
        %v746 = vpop.permute.xlu0 %745
        %747 = vrot.lane.b32.xlu0 %v727, 127
        %v748 = vpop.permute.xlu0 %747
        %749 = vrot.lane.b32.xlu0 %v729, 127
        %v750 = vpop.permute.xlu0 %749
        %751 = vrot.lane.b32.xlu0 %v728, 127
        %v752 = vpop.permute.xlu0 %751
        %753 = vrot.lane.b32.xlu0 %v732, 127
        %v754 = vpop.permute.xlu0 %753
        %755 = vrot.lane.b32.xlu0 %v734, 127
        %v756 = vpop.permute.xlu0 %755
        %757 = vrot.lane.b32.xlu0 %v733, 127
        %v758 = vpop.permute.xlu0 %757
        %v771 = vadd.f32 %v667, %v736
        %v772 = vadd.f32 %v668, %v738
        %v773 = vadd.f32 %v669, %v740
        %v774 = vadd.f32 %v670, %v742
        %v775 = vadd.f32 %v671, %v744
        %v776 = vadd.f32 %v672, %v746
        %v777 = vadd.f32 %v673, %v748
        %v778 = vadd.f32 %v674, %v750
        %v779 = vadd.f32 %v675, %v752
        %v780 = vadd.f32 %v676, %v754
        %v781 = vadd.f32 %v677, %v756
        %v782 = vadd.f32 %v678, %v758
        %v783 = vsub.f32 %v142, %v359
        %v784 = vsub.f32 %v143, %v361
        %v785 = vsub.f32 %v144, %v363
        %v786 = vsub.f32 %v145, %v365
        %v787 = vsub.f32 %v146, %v367
        %v788 = vsub.f32 %v147, %v369
        %v789 = vsub.f32 %v148, %v371
        %v790 = vsub.f32 %v149, %v373
        %v791 = vsub.f32 %v150, %v375
        %v792 = vsub.f32 %v151, %v377
        %v793 = vsub.f32 %v152, %v379
        %v794 = vsub.f32 %v153, %v381
        %v795 = vmul.f32 %v783, 0.55557024
        %v796 = vmul.f32 %v784, 0.55557024
        %v797 = vmul.f32 %v785, 0.55557024
        %v798 = vmul.f32 %v786, 0.55557024
        %v799 = vmul.f32 %v787, 0.55557024
        %v800 = vmul.f32 %v788, 0.55557024
        %v801 = vmul.f32 %v789, 0.55557024
        %v802 = vmul.f32 %v790, 0.55557024
        %v803 = vmul.f32 %v791, 0.55557024
        %v804 = vmul.f32 %v792, 0.55557024
        %v805 = vmul.f32 %v793, 0.55557024
        %v806 = vmul.f32 %v794, 0.55557024
        %v819 = vrot.slane %v795, 1
        %v820 = vrot.slane %v796, 1
        %v821 = vsel %vm634, %v819, %v820
        %v822 = vrot.slane %v797, 1
        %v823 = vsel %vm634, %v820, %v822
        %v824 = vrot.slane %v798, 1
        %v825 = vrot.slane %v799, 1
        %v826 = vsel %vm634, %v824, %v825
        %v827 = vrot.slane %v800, 1
        %v828 = vsel %vm634, %v825, %v827
        %v829 = vrot.slane %v801, 1
        %v830 = vrot.slane %v802, 1
        %v831 = vsel %vm634, %v829, %v830
        %v832 = vrot.slane %v803, 1
        %v833 = vsel %vm634, %v830, %v832
        %v834 = vrot.slane %v804, 1
        %v835 = vrot.slane %v805, 1
        %v836 = vsel %vm634, %v834, %v835
        %v837 = vrot.slane %v806, 1
        %v838 = vsel %vm634, %v835, %v837
        %839 = vrot.lane.b32.xlu0 %v821, 126
        %v840 = vpop.permute.xlu0 %839
        %841 = vrot.lane.b32.xlu0 %v823, 126
        %v842 = vpop.permute.xlu0 %841
        %843 = vrot.lane.b32.xlu0 %v822, 126
        %v844 = vpop.permute.xlu0 %843
        %845 = vrot.lane.b32.xlu0 %v826, 126
        %v846 = vpop.permute.xlu0 %845
        %847 = vrot.lane.b32.xlu0 %v828, 126
        %v848 = vpop.permute.xlu0 %847
        %849 = vrot.lane.b32.xlu0 %v827, 126
        %v850 = vpop.permute.xlu0 %849
        %851 = vrot.lane.b32.xlu0 %v831, 126
        %v852 = vpop.permute.xlu0 %851
        %853 = vrot.lane.b32.xlu0 %v833, 126
        %v854 = vpop.permute.xlu0 %853
        %855 = vrot.lane.b32.xlu0 %v832, 126
        %v856 = vpop.permute.xlu0 %855
        %857 = vrot.lane.b32.xlu0 %v836, 126
        %v858 = vpop.permute.xlu0 %857
        %859 = vrot.lane.b32.xlu0 %v838, 126
        %v860 = vpop.permute.xlu0 %859
        %861 = vrot.lane.b32.xlu0 %v837, 126
        %v862 = vpop.permute.xlu0 %861
        %v875 = vadd.f32 %v771, %v840
        %v876 = vadd.f32 %v772, %v842
        %v877 = vadd.f32 %v773, %v844
        %v878 = vadd.f32 %v774, %v846
        %v879 = vadd.f32 %v775, %v848
        %v880 = vadd.f32 %v776, %v850
        %v881 = vadd.f32 %v777, %v852
        %v882 = vadd.f32 %v778, %v854
        %v883 = vadd.f32 %v779, %v856
        %v884 = vadd.f32 %v780, %v858
        %v885 = vadd.f32 %v781, %v860
        %v886 = vadd.f32 %v782, %v862
        %v887 = vsub.f32 %v142, %v479
        %v888 = vsub.f32 %v143, %v481
        %v889 = vsub.f32 %v144, %v483
        %v890 = vsub.f32 %v145, %v485
        %v891 = vsub.f32 %v146, %v487
        %v892 = vsub.f32 %v147, %v489
        %v893 = vsub.f32 %v148, %v491
        %v894 = vsub.f32 %v149, %v493
        %v895 = vsub.f32 %v150, %v495
        %v896 = vsub.f32 %v151, %v497
        %v897 = vsub.f32 %v152, %v499
        %v898 = vsub.f32 %v153, %v501
        %v899 = vmul.f32 %v887, 0.19509032
        %v900 = vmul.f32 %v888, 0.19509032
        %v901 = vmul.f32 %v889, 0.19509032
        %v902 = vmul.f32 %v890, 0.19509032
        %v903 = vmul.f32 %v891, 0.19509032
        %v904 = vmul.f32 %v892, 0.19509032
        %v905 = vmul.f32 %v893, 0.19509032
        %v906 = vmul.f32 %v894, 0.19509032
        %v907 = vmul.f32 %v895, 0.19509032
        %v908 = vmul.f32 %v896, 0.19509032
        %v909 = vmul.f32 %v897, 0.19509032
        %v910 = vmul.f32 %v898, 0.19509032
        %v923 = vrot.slane %v899, 1
        %v924 = vrot.slane %v900, 1
        %v925 = vsel %vm634, %v923, %v924
        %v926 = vrot.slane %v901, 1
        %v927 = vsel %vm634, %v924, %v926
        %v928 = vrot.slane %v902, 1
        %v929 = vrot.slane %v903, 1
        %v930 = vsel %vm634, %v928, %v929
        %v931 = vrot.slane %v904, 1
        %v932 = vsel %vm634, %v929, %v931
        %v933 = vrot.slane %v905, 1
        %v934 = vrot.slane %v906, 1
        %v935 = vsel %vm634, %v933, %v934
        %v936 = vrot.slane %v907, 1
        %v937 = vsel %vm634, %v934, %v936
        %v938 = vrot.slane %v908, 1
        %v939 = vrot.slane %v909, 1
        %v940 = vsel %vm634, %v938, %v939
        %v941 = vrot.slane %v910, 1
        %v942 = vsel %vm634, %v939, %v941
        %943 = vrot.lane.b32.xlu0 %v925, 125
        %v944 = vpop.permute.xlu0 %943
        %945 = vrot.lane.b32.xlu0 %v927, 125
        %v946 = vpop.permute.xlu0 %945
        %947 = vrot.lane.b32.xlu0 %v926, 125
        %v948 = vpop.permute.xlu0 %947
        %949 = vrot.lane.b32.xlu0 %v930, 125
        %v950 = vpop.permute.xlu0 %949
        %951 = vrot.lane.b32.xlu0 %v932, 125
        %v952 = vpop.permute.xlu0 %951
        %953 = vrot.lane.b32.xlu0 %v931, 125
        %v954 = vpop.permute.xlu0 %953
        %955 = vrot.lane.b32.xlu0 %v935, 125
        %v956 = vpop.permute.xlu0 %955
        %957 = vrot.lane.b32.xlu0 %v937, 125
        %v958 = vpop.permute.xlu0 %957
        %959 = vrot.lane.b32.xlu0 %v936, 125
        %v960 = vpop.permute.xlu0 %959
        %961 = vrot.lane.b32.xlu0 %v940, 125
        %v962 = vpop.permute.xlu0 %961
        %963 = vrot.lane.b32.xlu0 %v942, 125
        %v964 = vpop.permute.xlu0 %963
        %965 = vrot.lane.b32.xlu0 %v941, 125
        %v966 = vpop.permute.xlu0 %965
        %v979 = vadd.f32 %v875, %v944
        %v980 = vadd.f32 %v876, %v946
        %v981 = vadd.f32 %v877, %v948
        %v982 = vadd.f32 %v878, %v950
        %v983 = vadd.f32 %v879, %v952
        %v984 = vadd.f32 %v880, %v954
        %v985 = vadd.f32 %v881, %v956
        %v986 = vadd.f32 %v882, %v958
        %v987 = vadd.f32 %v883, %v960
        %v988 = vadd.f32 %v884, %v962
        %v989 = vadd.f32 %v885, %v964
        %v990 = vadd.f32 %v886, %v966
        %v991 = vmul.f32 %v202, 0.9238795
        %v992 = vmul.f32 %v203, 0.9238795
        %v993 = vmul.f32 %v204, 0.9238795
        %v994 = vmul.f32 %v205, 0.9238795
        %v995 = vmul.f32 %v206, 0.9238795
        %v996 = vmul.f32 %v207, 0.9238795
        %v997 = vmul.f32 %v208, 0.9238795
        %v998 = vmul.f32 %v209, 0.9238795
        %v999 = vmul.f32 %v210, 0.9238795
        %v1000 = vmul.f32 %v211, 0.9238795
        %v1001 = vmul.f32 %v212, 0.9238795
        %v1002 = vmul.f32 %v213, 0.9238795
        %vm1015 = vcmask 1045504
        %v1016 = vrot.slane %v991, 2
        %v1017 = vrot.slane %v992, 2
        %v1018 = vsel %vm1015, %v1016, %v1017
        %v1019 = vrot.slane %v993, 2
        %v1020 = vsel %vm1015, %v1017, %v1019
        %v1021 = vrot.slane %v994, 2
        %v1022 = vrot.slane %v995, 2
        %v1023 = vsel %vm1015, %v1021, %v1022
        %v1024 = vrot.slane %v996, 2
        %v1025 = vsel %vm1015, %v1022, %v1024
        %v1026 = vrot.slane %v997, 2
        %v1027 = vrot.slane %v998, 2
        %v1028 = vsel %vm1015, %v1026, %v1027
        %v1029 = vrot.slane %v999, 2
        %v1030 = vsel %vm1015, %v1027, %v1029
        %v1031 = vrot.slane %v1000, 2
        %v1032 = vrot.slane %v1001, 2
        %v1033 = vsel %vm1015, %v1031, %v1032
        %v1034 = vrot.slane %v1002, 2
        %v1035 = vsel %vm1015, %v1032, %v1034
        %v1048 = vadd.f32 %v979, %v1018
        %v1049 = vadd.f32 %v980, %v1020
        %v1050 = vadd.f32 %v981, %v1019
        %v1051 = vadd.f32 %v982, %v1023
        %v1052 = vadd.f32 %v983, %v1025
        %v1053 = vadd.f32 %v984, %v1024
        %v1054 = vadd.f32 %v985, %v1028
        %v1055 = vadd.f32 %v986, %v1030
        %v1056 = vadd.f32 %v987, %v1029
        %v1057 = vadd.f32 %v988, %v1033
        %v1058 = vadd.f32 %v989, %v1035
        %v1059 = vadd.f32 %v990, %v1034
        %v1060 = vmul.f32 %v274, 0.38268343
        %v1061 = vmul.f32 %v275, 0.38268343
        %v1062 = vmul.f32 %v276, 0.38268343
        %v1063 = vmul.f32 %v277, 0.38268343
        %v1064 = vmul.f32 %v278, 0.38268343
        %v1065 = vmul.f32 %v279, 0.38268343
        %v1066 = vmul.f32 %v280, 0.38268343
        %v1067 = vmul.f32 %v281, 0.38268343
        %v1068 = vmul.f32 %v282, 0.38268343
        %v1069 = vmul.f32 %v283, 0.38268343
        %v1070 = vmul.f32 %v284, 0.38268343
        %v1071 = vmul.f32 %v285, 0.38268343
        %v1084 = vrot.slane %v1060, 2
        %v1085 = vrot.slane %v1061, 2
        %v1086 = vsel %vm1015, %v1084, %v1085
        %v1087 = vrot.slane %v1062, 2
        %v1088 = vsel %vm1015, %v1085, %v1087
        %v1089 = vrot.slane %v1063, 2
        %v1090 = vrot.slane %v1064, 2
        %v1091 = vsel %vm1015, %v1089, %v1090
        %v1092 = vrot.slane %v1065, 2
        %v1093 = vsel %vm1015, %v1090, %v1092
        %v1094 = vrot.slane %v1066, 2
        %v1095 = vrot.slane %v1067, 2
        %v1096 = vsel %vm1015, %v1094, %v1095
        %v1097 = vrot.slane %v1068, 2
        %v1098 = vsel %vm1015, %v1095, %v1097
        %v1099 = vrot.slane %v1069, 2
        %v1100 = vrot.slane %v1070, 2
        %v1101 = vsel %vm1015, %v1099, %v1100
        %v1102 = vrot.slane %v1071, 2
        %v1103 = vsel %vm1015, %v1100, %v1102
        %1104 = vrot.lane.b32.xlu0 %v1086, 127
        %v1105 = vpop.permute.xlu0 %1104
        %1106 = vrot.lane.b32.xlu0 %v1088, 127
        %v1107 = vpop.permute.xlu0 %1106
        %1108 = vrot.lane.b32.xlu0 %v1087, 127
        %v1109 = vpop.permute.xlu0 %1108
        %1110 = vrot.lane.b32.xlu0 %v1091, 127
        %v1111 = vpop.permute.xlu0 %1110
        %1112 = vrot.lane.b32.xlu0 %v1093, 127
        %v1113 = vpop.permute.xlu0 %1112
        %1114 = vrot.lane.b32.xlu0 %v1092, 127
        %v1115 = vpop.permute.xlu0 %1114
        %1116 = vrot.lane.b32.xlu0 %v1096, 127
        %v1117 = vpop.permute.xlu0 %1116
        %1118 = vrot.lane.b32.xlu0 %v1098, 127
        %v1119 = vpop.permute.xlu0 %1118
        %1120 = vrot.lane.b32.xlu0 %v1097, 127
        %v1121 = vpop.permute.xlu0 %1120
        %1122 = vrot.lane.b32.xlu0 %v1101, 127
        %v1123 = vpop.permute.xlu0 %1122
        %1124 = vrot.lane.b32.xlu0 %v1103, 127
        %v1125 = vpop.permute.xlu0 %1124
        %1126 = vrot.lane.b32.xlu0 %v1102, 127
        %v1127 = vpop.permute.xlu0 %1126
        %v1140 = vadd.f32 %v1048, %v1105
        %v1141 = vadd.f32 %v1049, %v1107
        %v1142 = vadd.f32 %v1050, %v1109
        %v1143 = vadd.f32 %v1051, %v1111
        %v1144 = vadd.f32 %v1052, %v1113
        %v1145 = vadd.f32 %v1053, %v1115
        %v1146 = vadd.f32 %v1054, %v1117
        %v1147 = vadd.f32 %v1055, %v1119
        %v1148 = vadd.f32 %v1056, %v1121
        %v1149 = vadd.f32 %v1057, %v1123
        %v1150 = vadd.f32 %v1058, %v1125
        %v1151 = vadd.f32 %v1059, %v1127
        %v1152 = vmul.f32 %v394, -0.38268343
        %v1153 = vmul.f32 %v395, -0.38268343
        %v1154 = vmul.f32 %v396, -0.38268343
        %v1155 = vmul.f32 %v397, -0.38268343
        %v1156 = vmul.f32 %v398, -0.38268343
        %v1157 = vmul.f32 %v399, -0.38268343
        %v1158 = vmul.f32 %v400, -0.38268343
        %v1159 = vmul.f32 %v401, -0.38268343
        %v1160 = vmul.f32 %v402, -0.38268343
        %v1161 = vmul.f32 %v403, -0.38268343
        %v1162 = vmul.f32 %v404, -0.38268343
        %v1163 = vmul.f32 %v405, -0.38268343
        %v1176 = vrot.slane %v1152, 2
        %v1177 = vrot.slane %v1153, 2
        %v1178 = vsel %vm1015, %v1176, %v1177
        %v1179 = vrot.slane %v1154, 2
        %v1180 = vsel %vm1015, %v1177, %v1179
        %v1181 = vrot.slane %v1155, 2
        %v1182 = vrot.slane %v1156, 2
        %v1183 = vsel %vm1015, %v1181, %v1182
        %v1184 = vrot.slane %v1157, 2
        %v1185 = vsel %vm1015, %v1182, %v1184
        %v1186 = vrot.slane %v1158, 2
        %v1187 = vrot.slane %v1159, 2
        %v1188 = vsel %vm1015, %v1186, %v1187
        %v1189 = vrot.slane %v1160, 2
        %v1190 = vsel %vm1015, %v1187, %v1189
        %v1191 = vrot.slane %v1161, 2
        %v1192 = vrot.slane %v1162, 2
        %v1193 = vsel %vm1015, %v1191, %v1192
        %v1194 = vrot.slane %v1163, 2
        %v1195 = vsel %vm1015, %v1192, %v1194
        %1196 = vrot.lane.b32.xlu0 %v1178, 126
        %v1197 = vpop.permute.xlu0 %1196
        %1198 = vrot.lane.b32.xlu0 %v1180, 126
        %v1199 = vpop.permute.xlu0 %1198
        %1200 = vrot.lane.b32.xlu0 %v1179, 126
        %v1201 = vpop.permute.xlu0 %1200
        %1202 = vrot.lane.b32.xlu0 %v1183, 126
        %v1203 = vpop.permute.xlu0 %1202
        %1204 = vrot.lane.b32.xlu0 %v1185, 126
        %v1205 = vpop.permute.xlu0 %1204
        %1206 = vrot.lane.b32.xlu0 %v1184, 126
        %v1207 = vpop.permute.xlu0 %1206
        %1208 = vrot.lane.b32.xlu0 %v1188, 126
        %v1209 = vpop.permute.xlu0 %1208
        %1210 = vrot.lane.b32.xlu0 %v1190, 126
        %v1211 = vpop.permute.xlu0 %1210
        %1212 = vrot.lane.b32.xlu0 %v1189, 126
        %v1213 = vpop.permute.xlu0 %1212
        %1214 = vrot.lane.b32.xlu0 %v1193, 126
        %v1215 = vpop.permute.xlu0 %1214
        %1216 = vrot.lane.b32.xlu0 %v1195, 126
        %v1217 = vpop.permute.xlu0 %1216
        %1218 = vrot.lane.b32.xlu0 %v1194, 126
        %v1219 = vpop.permute.xlu0 %1218
        %v1232 = vadd.f32 %v1140, %v1197
        %v1233 = vadd.f32 %v1141, %v1199
        %v1234 = vadd.f32 %v1142, %v1201
        %v1235 = vadd.f32 %v1143, %v1203
        %v1236 = vadd.f32 %v1144, %v1205
        %v1237 = vadd.f32 %v1145, %v1207
        %v1238 = vadd.f32 %v1146, %v1209
        %v1239 = vadd.f32 %v1147, %v1211
        %v1240 = vadd.f32 %v1148, %v1213
        %v1241 = vadd.f32 %v1149, %v1215
        %v1242 = vadd.f32 %v1150, %v1217
        %v1243 = vadd.f32 %v1151, %v1219
        %v1244 = vmul.f32 %v514, -0.9238795
        %v1245 = vmul.f32 %v515, -0.9238795
        %v1246 = vmul.f32 %v516, -0.9238795
        %v1247 = vmul.f32 %v517, -0.9238795
        %v1248 = vmul.f32 %v518, -0.9238795
        %v1249 = vmul.f32 %v519, -0.9238795
        %v1250 = vmul.f32 %v520, -0.9238795
        %v1251 = vmul.f32 %v521, -0.9238795
        %v1252 = vmul.f32 %v522, -0.9238795
        %v1253 = vmul.f32 %v523, -0.9238795
        %v1254 = vmul.f32 %v524, -0.9238795
        %v1255 = vmul.f32 %v525, -0.9238795
        %v1268 = vrot.slane %v1244, 2
        %v1269 = vrot.slane %v1245, 2
        %v1270 = vsel %vm1015, %v1268, %v1269
        %v1271 = vrot.slane %v1246, 2
        %v1272 = vsel %vm1015, %v1269, %v1271
        %v1273 = vrot.slane %v1247, 2
        %v1274 = vrot.slane %v1248, 2
        %v1275 = vsel %vm1015, %v1273, %v1274
        %v1276 = vrot.slane %v1249, 2
        %v1277 = vsel %vm1015, %v1274, %v1276
        %v1278 = vrot.slane %v1250, 2
        %v1279 = vrot.slane %v1251, 2
        %v1280 = vsel %vm1015, %v1278, %v1279
        %v1281 = vrot.slane %v1252, 2
        %v1282 = vsel %vm1015, %v1279, %v1281
        %v1283 = vrot.slane %v1253, 2
        %v1284 = vrot.slane %v1254, 2
        %v1285 = vsel %vm1015, %v1283, %v1284
        %v1286 = vrot.slane %v1255, 2
        %v1287 = vsel %vm1015, %v1284, %v1286
        %1288 = vrot.lane.b32.xlu0 %v1270, 125
        %v1289 = vpop.permute.xlu0 %1288
        %1290 = vrot.lane.b32.xlu0 %v1272, 125
        %v1291 = vpop.permute.xlu0 %1290
        %1292 = vrot.lane.b32.xlu0 %v1271, 125
        %v1293 = vpop.permute.xlu0 %1292
        %1294 = vrot.lane.b32.xlu0 %v1275, 125
        %v1295 = vpop.permute.xlu0 %1294
        %1296 = vrot.lane.b32.xlu0 %v1277, 125
        %v1297 = vpop.permute.xlu0 %1296
        %1298 = vrot.lane.b32.xlu0 %v1276, 125
        %v1299 = vpop.permute.xlu0 %1298
        %1300 = vrot.lane.b32.xlu0 %v1280, 125
        %v1301 = vpop.permute.xlu0 %1300
        %1302 = vrot.lane.b32.xlu0 %v1282, 125
        %v1303 = vpop.permute.xlu0 %1302
        %1304 = vrot.lane.b32.xlu0 %v1281, 125
        %v1305 = vpop.permute.xlu0 %1304
        %1306 = vrot.lane.b32.xlu0 %v1285, 125
        %v1307 = vpop.permute.xlu0 %1306
        %1308 = vrot.lane.b32.xlu0 %v1287, 125
        %v1309 = vpop.permute.xlu0 %1308
        %1310 = vrot.lane.b32.xlu0 %v1286, 125
        %v1311 = vpop.permute.xlu0 %1310
        %v1324 = vadd.f32 %v1232, %v1289
        %v1325 = vadd.f32 %v1233, %v1291
        %v1326 = vadd.f32 %v1234, %v1293
        %v1327 = vadd.f32 %v1235, %v1295
        %v1328 = vadd.f32 %v1236, %v1297
        %v1329 = vadd.f32 %v1237, %v1299
        %v1330 = vadd.f32 %v1238, %v1301
        %v1331 = vadd.f32 %v1239, %v1303
        %v1332 = vadd.f32 %v1240, %v1305
        %v1333 = vadd.f32 %v1241, %v1307
        %v1334 = vadd.f32 %v1242, %v1309
        %v1335 = vadd.f32 %v1243, %v1311
        %v1336 = vmul.f32 %v598, 0.8314696
        %v1337 = vmul.f32 %v599, 0.8314696
        %v1338 = vmul.f32 %v600, 0.8314696
        %v1339 = vmul.f32 %v601, 0.8314696
        %v1340 = vmul.f32 %v602, 0.8314696
        %v1341 = vmul.f32 %v603, 0.8314696
        %v1342 = vmul.f32 %v604, 0.8314696
        %v1343 = vmul.f32 %v605, 0.8314696
        %v1344 = vmul.f32 %v606, 0.8314696
        %v1345 = vmul.f32 %v607, 0.8314696
        %v1346 = vmul.f32 %v608, 0.8314696
        %v1347 = vmul.f32 %v609, 0.8314696
        %vm1360 = vcmask 1044480
        %v1361 = vrot.slane %v1336, 3
        %v1362 = vrot.slane %v1337, 3
        %v1363 = vsel %vm1360, %v1361, %v1362
        %v1364 = vrot.slane %v1338, 3
        %v1365 = vsel %vm1360, %v1362, %v1364
        %v1366 = vrot.slane %v1339, 3
        %v1367 = vrot.slane %v1340, 3
        %v1368 = vsel %vm1360, %v1366, %v1367
        %v1369 = vrot.slane %v1341, 3
        %v1370 = vsel %vm1360, %v1367, %v1369
        %v1371 = vrot.slane %v1342, 3
        %v1372 = vrot.slane %v1343, 3
        %v1373 = vsel %vm1360, %v1371, %v1372
        %v1374 = vrot.slane %v1344, 3
        %v1375 = vsel %vm1360, %v1372, %v1374
        %v1376 = vrot.slane %v1345, 3
        %v1377 = vrot.slane %v1346, 3
        %v1378 = vsel %vm1360, %v1376, %v1377
        %v1379 = vrot.slane %v1347, 3
        %v1380 = vsel %vm1360, %v1377, %v1379
        %v1393 = vadd.f32 %v1324, %v1363
        %v1394 = vadd.f32 %v1325, %v1365
        %v1395 = vadd.f32 %v1326, %v1364
        %v1396 = vadd.f32 %v1327, %v1368
        %v1397 = vadd.f32 %v1328, %v1370
        %v1398 = vadd.f32 %v1329, %v1369
        %v1399 = vadd.f32 %v1330, %v1373
        %v1400 = vadd.f32 %v1331, %v1375
        %v1401 = vadd.f32 %v1332, %v1374
        %v1402 = vadd.f32 %v1333, %v1378
        %v1403 = vadd.f32 %v1334, %v1380
        %v1404 = vadd.f32 %v1335, %v1379
        %v1405 = vmul.f32 %v679, -0.19509032
        %v1406 = vmul.f32 %v680, -0.19509032
        %v1407 = vmul.f32 %v681, -0.19509032
        %v1408 = vmul.f32 %v682, -0.19509032
        %v1409 = vmul.f32 %v683, -0.19509032
        %v1410 = vmul.f32 %v684, -0.19509032
        %v1411 = vmul.f32 %v685, -0.19509032
        %v1412 = vmul.f32 %v686, -0.19509032
        %v1413 = vmul.f32 %v687, -0.19509032
        %v1414 = vmul.f32 %v688, -0.19509032
        %v1415 = vmul.f32 %v689, -0.19509032
        %v1416 = vmul.f32 %v690, -0.19509032
        %v1429 = vrot.slane %v1405, 3
        %v1430 = vrot.slane %v1406, 3
        %v1431 = vsel %vm1360, %v1429, %v1430
        %v1432 = vrot.slane %v1407, 3
        %v1433 = vsel %vm1360, %v1430, %v1432
        %v1434 = vrot.slane %v1408, 3
        %v1435 = vrot.slane %v1409, 3
        %v1436 = vsel %vm1360, %v1434, %v1435
        %v1437 = vrot.slane %v1410, 3
        %v1438 = vsel %vm1360, %v1435, %v1437
        %v1439 = vrot.slane %v1411, 3
        %v1440 = vrot.slane %v1412, 3
        %v1441 = vsel %vm1360, %v1439, %v1440
        %v1442 = vrot.slane %v1413, 3
        %v1443 = vsel %vm1360, %v1440, %v1442
        %v1444 = vrot.slane %v1414, 3
        %v1445 = vrot.slane %v1415, 3
        %v1446 = vsel %vm1360, %v1444, %v1445
        %v1447 = vrot.slane %v1416, 3
        %v1448 = vsel %vm1360, %v1445, %v1447
        %1449 = vrot.lane.b32.xlu0 %v1431, 127
        %v1450 = vpop.permute.xlu0 %1449
        %1451 = vrot.lane.b32.xlu0 %v1433, 127
        %v1452 = vpop.permute.xlu0 %1451
        %1453 = vrot.lane.b32.xlu0 %v1432, 127
        %v1454 = vpop.permute.xlu0 %1453
        %1455 = vrot.lane.b32.xlu0 %v1436, 127
        %v1456 = vpop.permute.xlu0 %1455
        %1457 = vrot.lane.b32.xlu0 %v1438, 127
        %v1458 = vpop.permute.xlu0 %1457
        %1459 = vrot.lane.b32.xlu0 %v1437, 127
        %v1460 = vpop.permute.xlu0 %1459
        %1461 = vrot.lane.b32.xlu0 %v1441, 127
        %v1462 = vpop.permute.xlu0 %1461
        %1463 = vrot.lane.b32.xlu0 %v1443, 127
        %v1464 = vpop.permute.xlu0 %1463
        %1465 = vrot.lane.b32.xlu0 %v1442, 127
        %v1466 = vpop.permute.xlu0 %1465
        %1467 = vrot.lane.b32.xlu0 %v1446, 127
        %v1468 = vpop.permute.xlu0 %1467
        %1469 = vrot.lane.b32.xlu0 %v1448, 127
        %v1470 = vpop.permute.xlu0 %1469
        %1471 = vrot.lane.b32.xlu0 %v1447, 127
        %v1472 = vpop.permute.xlu0 %1471
        %v1485 = vadd.f32 %v1393, %v1450
        %v1486 = vadd.f32 %v1394, %v1452
        %v1487 = vadd.f32 %v1395, %v1454
        %v1488 = vadd.f32 %v1396, %v1456
        %v1489 = vadd.f32 %v1397, %v1458
        %v1490 = vadd.f32 %v1398, %v1460
        %v1491 = vadd.f32 %v1399, %v1462
        %v1492 = vadd.f32 %v1400, %v1464
        %v1493 = vadd.f32 %v1401, %v1466
        %v1494 = vadd.f32 %v1402, %v1468
        %v1495 = vadd.f32 %v1403, %v1470
        %v1496 = vadd.f32 %v1404, %v1472
        %v1497 = vmul.f32 %v783, -0.98078525
        %v1498 = vmul.f32 %v784, -0.98078525
        %v1499 = vmul.f32 %v785, -0.98078525
        %v1500 = vmul.f32 %v786, -0.98078525
        %v1501 = vmul.f32 %v787, -0.98078525
        %v1502 = vmul.f32 %v788, -0.98078525
        %v1503 = vmul.f32 %v789, -0.98078525
        %v1504 = vmul.f32 %v790, -0.98078525
        %v1505 = vmul.f32 %v791, -0.98078525
        %v1506 = vmul.f32 %v792, -0.98078525
        %v1507 = vmul.f32 %v793, -0.98078525
        %v1508 = vmul.f32 %v794, -0.98078525
        %v1521 = vrot.slane %v1497, 3
        %v1522 = vrot.slane %v1498, 3
        %v1523 = vsel %vm1360, %v1521, %v1522
        %v1524 = vrot.slane %v1499, 3
        %v1525 = vsel %vm1360, %v1522, %v1524
        %v1526 = vrot.slane %v1500, 3
        %v1527 = vrot.slane %v1501, 3
        %v1528 = vsel %vm1360, %v1526, %v1527
        %v1529 = vrot.slane %v1502, 3
        %v1530 = vsel %vm1360, %v1527, %v1529
        %v1531 = vrot.slane %v1503, 3
        %v1532 = vrot.slane %v1504, 3
        %v1533 = vsel %vm1360, %v1531, %v1532
        %v1534 = vrot.slane %v1505, 3
        %v1535 = vsel %vm1360, %v1532, %v1534
        %v1536 = vrot.slane %v1506, 3
        %v1537 = vrot.slane %v1507, 3
        %v1538 = vsel %vm1360, %v1536, %v1537
        %v1539 = vrot.slane %v1508, 3
        %v1540 = vsel %vm1360, %v1537, %v1539
        %1541 = vrot.lane.b32.xlu0 %v1523, 126
        %v1542 = vpop.permute.xlu0 %1541
        %1543 = vrot.lane.b32.xlu0 %v1525, 126
        %v1544 = vpop.permute.xlu0 %1543
        %1545 = vrot.lane.b32.xlu0 %v1524, 126
        %v1546 = vpop.permute.xlu0 %1545
        %1547 = vrot.lane.b32.xlu0 %v1528, 126
        %v1548 = vpop.permute.xlu0 %1547
        %1549 = vrot.lane.b32.xlu0 %v1530, 126
        %v1550 = vpop.permute.xlu0 %1549
        %1551 = vrot.lane.b32.xlu0 %v1529, 126
        %v1552 = vpop.permute.xlu0 %1551
        %1553 = vrot.lane.b32.xlu0 %v1533, 126
        %v1554 = vpop.permute.xlu0 %1553
        %1555 = vrot.lane.b32.xlu0 %v1535, 126
        %v1556 = vpop.permute.xlu0 %1555
        %1557 = vrot.lane.b32.xlu0 %v1534, 126
        %v1558 = vpop.permute.xlu0 %1557
        %1559 = vrot.lane.b32.xlu0 %v1538, 126
        %v1560 = vpop.permute.xlu0 %1559
        %1561 = vrot.lane.b32.xlu0 %v1540, 126
        %v1562 = vpop.permute.xlu0 %1561
        %1563 = vrot.lane.b32.xlu0 %v1539, 126
        %v1564 = vpop.permute.xlu0 %1563
        %v1577 = vadd.f32 %v1485, %v1542
        %v1578 = vadd.f32 %v1486, %v1544
        %v1579 = vadd.f32 %v1487, %v1546
        %v1580 = vadd.f32 %v1488, %v1548
        %v1581 = vadd.f32 %v1489, %v1550
        %v1582 = vadd.f32 %v1490, %v1552
        %v1583 = vadd.f32 %v1491, %v1554
        %v1584 = vadd.f32 %v1492, %v1556
        %v1585 = vadd.f32 %v1493, %v1558
        %v1586 = vadd.f32 %v1494, %v1560
        %v1587 = vadd.f32 %v1495, %v1562
        %v1588 = vadd.f32 %v1496, %v1564
        %v1589 = vmul.f32 %v887, -0.55557024
        %v1590 = vmul.f32 %v888, -0.55557024
        %v1591 = vmul.f32 %v889, -0.55557024
        %v1592 = vmul.f32 %v890, -0.55557024
        %v1593 = vmul.f32 %v891, -0.55557024
        %v1594 = vmul.f32 %v892, -0.55557024
        %v1595 = vmul.f32 %v893, -0.55557024
        %v1596 = vmul.f32 %v894, -0.55557024
        %v1597 = vmul.f32 %v895, -0.55557024
        %v1598 = vmul.f32 %v896, -0.55557024
        %v1599 = vmul.f32 %v897, -0.55557024
        %v1600 = vmul.f32 %v898, -0.55557024
        %v1613 = vrot.slane %v1589, 3
        %v1614 = vrot.slane %v1590, 3
        %v1615 = vsel %vm1360, %v1613, %v1614
        %v1616 = vrot.slane %v1591, 3
        %v1617 = vsel %vm1360, %v1614, %v1616
        %v1618 = vrot.slane %v1592, 3
        %v1619 = vrot.slane %v1593, 3
        %v1620 = vsel %vm1360, %v1618, %v1619
        %v1621 = vrot.slane %v1594, 3
        %v1622 = vsel %vm1360, %v1619, %v1621
        %v1623 = vrot.slane %v1595, 3
        %v1624 = vrot.slane %v1596, 3
        %v1625 = vsel %vm1360, %v1623, %v1624
        %v1626 = vrot.slane %v1597, 3
        %v1627 = vsel %vm1360, %v1624, %v1626
        %v1628 = vrot.slane %v1598, 3
        %v1629 = vrot.slane %v1599, 3
        %v1630 = vsel %vm1360, %v1628, %v1629
        %v1631 = vrot.slane %v1600, 3
        %v1632 = vsel %vm1360, %v1629, %v1631
        %1633 = vrot.lane.b32.xlu0 %v1615, 125
        %v1634 = vpop.permute.xlu0 %1633
        %1635 = vrot.lane.b32.xlu0 %v1617, 125
        %v1636 = vpop.permute.xlu0 %1635
        %1637 = vrot.lane.b32.xlu0 %v1616, 125
        %v1638 = vpop.permute.xlu0 %1637
        %1639 = vrot.lane.b32.xlu0 %v1620, 125
        %v1640 = vpop.permute.xlu0 %1639
        %1641 = vrot.lane.b32.xlu0 %v1622, 125
        %v1642 = vpop.permute.xlu0 %1641
        %1643 = vrot.lane.b32.xlu0 %v1621, 125
        %v1644 = vpop.permute.xlu0 %1643
        %1645 = vrot.lane.b32.xlu0 %v1625, 125
        %v1646 = vpop.permute.xlu0 %1645
        %1647 = vrot.lane.b32.xlu0 %v1627, 125
        %v1648 = vpop.permute.xlu0 %1647
        %1649 = vrot.lane.b32.xlu0 %v1626, 125
        %v1650 = vpop.permute.xlu0 %1649
        %1651 = vrot.lane.b32.xlu0 %v1630, 125
        %v1652 = vpop.permute.xlu0 %1651
        %1653 = vrot.lane.b32.xlu0 %v1632, 125
        %v1654 = vpop.permute.xlu0 %1653
        %1655 = vrot.lane.b32.xlu0 %v1631, 125
        %v1656 = vpop.permute.xlu0 %1655
        %v1669 = vadd.f32 %v1577, %v1634
        %v1670 = vadd.f32 %v1578, %v1636
        %v1671 = vadd.f32 %v1579, %v1638
        %v1672 = vadd.f32 %v1580, %v1640
        %v1673 = vadd.f32 %v1581, %v1642
        %v1674 = vadd.f32 %v1582, %v1644
        %v1675 = vadd.f32 %v1583, %v1646
        %v1676 = vadd.f32 %v1584, %v1648
        %v1677 = vadd.f32 %v1585, %v1650
        %v1678 = vadd.f32 %v1586, %v1652
        %v1679 = vadd.f32 %v1587, %v1654
        %v1680 = vadd.f32 %v1588, %v1656
        %vm1693 = vcmask 1043456
        %v1694 = vrot.slane %v214, 4
        %v1695 = vrot.slane %v215, 4
        %v1696 = vsel %vm1693, %v1694, %v1695
        %v1697 = vrot.slane %v216, 4
        %v1698 = vsel %vm1693, %v1695, %v1697
        %v1699 = vrot.slane %v217, 4
        %v1700 = vrot.slane %v218, 4
        %v1701 = vsel %vm1693, %v1699, %v1700
        %v1702 = vrot.slane %v219, 4
        %v1703 = vsel %vm1693, %v1700, %v1702
        %v1704 = vrot.slane %v220, 4
        %v1705 = vrot.slane %v221, 4
        %v1706 = vsel %vm1693, %v1704, %v1705
        %v1707 = vrot.slane %v222, 4
        %v1708 = vsel %vm1693, %v1705, %v1707
        %v1709 = vrot.slane %v223, 4
        %v1710 = vrot.slane %v224, 4
        %v1711 = vsel %vm1693, %v1709, %v1710
        %v1712 = vrot.slane %v225, 4
        %v1713 = vsel %vm1693, %v1710, %v1712
        %v1726 = vadd.f32 %v1669, %v1696
        %v1727 = vadd.f32 %v1670, %v1698
        %v1728 = vadd.f32 %v1671, %v1697
        %v1729 = vadd.f32 %v1672, %v1701
        %v1730 = vadd.f32 %v1673, %v1703
        %v1731 = vadd.f32 %v1674, %v1702
        %v1732 = vadd.f32 %v1675, %v1706
        %v1733 = vadd.f32 %v1676, %v1708
        %v1734 = vadd.f32 %v1677, %v1707
        %v1735 = vadd.f32 %v1678, %v1711
        %v1736 = vadd.f32 %v1679, %v1713
        %v1737 = vadd.f32 %v1680, %v1712
        %v1738 = vmul.f32 %v274, -0.70710677
        %v1739 = vmul.f32 %v275, -0.70710677
        %v1740 = vmul.f32 %v276, -0.70710677
        %v1741 = vmul.f32 %v277, -0.70710677
        %v1742 = vmul.f32 %v278, -0.70710677
        %v1743 = vmul.f32 %v279, -0.70710677
        %v1744 = vmul.f32 %v280, -0.70710677
        %v1745 = vmul.f32 %v281, -0.70710677
        %v1746 = vmul.f32 %v282, -0.70710677
        %v1747 = vmul.f32 %v283, -0.70710677
        %v1748 = vmul.f32 %v284, -0.70710677
        %v1749 = vmul.f32 %v285, -0.70710677
        %v1762 = vrot.slane %v1738, 4
        %v1763 = vrot.slane %v1739, 4
        %v1764 = vsel %vm1693, %v1762, %v1763
        %v1765 = vrot.slane %v1740, 4
        %v1766 = vsel %vm1693, %v1763, %v1765
        %v1767 = vrot.slane %v1741, 4
        %v1768 = vrot.slane %v1742, 4
        %v1769 = vsel %vm1693, %v1767, %v1768
        %v1770 = vrot.slane %v1743, 4
        %v1771 = vsel %vm1693, %v1768, %v1770
        %v1772 = vrot.slane %v1744, 4
        %v1773 = vrot.slane %v1745, 4
        %v1774 = vsel %vm1693, %v1772, %v1773
        %v1775 = vrot.slane %v1746, 4
        %v1776 = vsel %vm1693, %v1773, %v1775
        %v1777 = vrot.slane %v1747, 4
        %v1778 = vrot.slane %v1748, 4
        %v1779 = vsel %vm1693, %v1777, %v1778
        %v1780 = vrot.slane %v1749, 4
        %v1781 = vsel %vm1693, %v1778, %v1780
        %1782 = vrot.lane.b32.xlu0 %v1764, 127
        %v1783 = vpop.permute.xlu0 %1782
        %1784 = vrot.lane.b32.xlu0 %v1766, 127
        %v1785 = vpop.permute.xlu0 %1784
        %1786 = vrot.lane.b32.xlu0 %v1765, 127
        %v1787 = vpop.permute.xlu0 %1786
        %1788 = vrot.lane.b32.xlu0 %v1769, 127
        %v1789 = vpop.permute.xlu0 %1788
        %1790 = vrot.lane.b32.xlu0 %v1771, 127
        %v1791 = vpop.permute.xlu0 %1790
        %1792 = vrot.lane.b32.xlu0 %v1770, 127
        %v1793 = vpop.permute.xlu0 %1792
        %1794 = vrot.lane.b32.xlu0 %v1774, 127
        %v1795 = vpop.permute.xlu0 %1794
        %1796 = vrot.lane.b32.xlu0 %v1776, 127
        %v1797 = vpop.permute.xlu0 %1796
        %1798 = vrot.lane.b32.xlu0 %v1775, 127
        %v1799 = vpop.permute.xlu0 %1798
        %1800 = vrot.lane.b32.xlu0 %v1779, 127
        %v1801 = vpop.permute.xlu0 %1800
        %1802 = vrot.lane.b32.xlu0 %v1781, 127
        %v1803 = vpop.permute.xlu0 %1802
        %1804 = vrot.lane.b32.xlu0 %v1780, 127
        %v1805 = vpop.permute.xlu0 %1804
        %v1818 = vadd.f32 %v1726, %v1783
        %v1819 = vadd.f32 %v1727, %v1785
        %v1820 = vadd.f32 %v1728, %v1787
        %v1821 = vadd.f32 %v1729, %v1789
        %v1822 = vadd.f32 %v1730, %v1791
        %v1823 = vadd.f32 %v1731, %v1793
        %v1824 = vadd.f32 %v1732, %v1795
        %v1825 = vadd.f32 %v1733, %v1797
        %v1826 = vadd.f32 %v1734, %v1799
        %v1827 = vadd.f32 %v1735, %v1801
        %v1828 = vadd.f32 %v1736, %v1803
        %v1829 = vadd.f32 %v1737, %v1805
        %v1830 = vmul.f32 %v394, -0.70710677
        %v1831 = vmul.f32 %v395, -0.70710677
        %v1832 = vmul.f32 %v396, -0.70710677
        %v1833 = vmul.f32 %v397, -0.70710677
        %v1834 = vmul.f32 %v398, -0.70710677
        %v1835 = vmul.f32 %v399, -0.70710677
        %v1836 = vmul.f32 %v400, -0.70710677
        %v1837 = vmul.f32 %v401, -0.70710677
        %v1838 = vmul.f32 %v402, -0.70710677
        %v1839 = vmul.f32 %v403, -0.70710677
        %v1840 = vmul.f32 %v404, -0.70710677
        %v1841 = vmul.f32 %v405, -0.70710677
        %v1854 = vrot.slane %v1830, 4
        %v1855 = vrot.slane %v1831, 4
        %v1856 = vsel %vm1693, %v1854, %v1855
        %v1857 = vrot.slane %v1832, 4
        %v1858 = vsel %vm1693, %v1855, %v1857
        %v1859 = vrot.slane %v1833, 4
        %v1860 = vrot.slane %v1834, 4
        %v1861 = vsel %vm1693, %v1859, %v1860
        %v1862 = vrot.slane %v1835, 4
        %v1863 = vsel %vm1693, %v1860, %v1862
        %v1864 = vrot.slane %v1836, 4
        %v1865 = vrot.slane %v1837, 4
        %v1866 = vsel %vm1693, %v1864, %v1865
        %v1867 = vrot.slane %v1838, 4
        %v1868 = vsel %vm1693, %v1865, %v1867
        %v1869 = vrot.slane %v1839, 4
        %v1870 = vrot.slane %v1840, 4
        %v1871 = vsel %vm1693, %v1869, %v1870
        %v1872 = vrot.slane %v1841, 4
        %v1873 = vsel %vm1693, %v1870, %v1872
        %1874 = vrot.lane.b32.xlu0 %v1856, 126
        %v1875 = vpop.permute.xlu0 %1874
        %1876 = vrot.lane.b32.xlu0 %v1858, 126
        %v1877 = vpop.permute.xlu0 %1876
        %1878 = vrot.lane.b32.xlu0 %v1857, 126
        %v1879 = vpop.permute.xlu0 %1878
        %1880 = vrot.lane.b32.xlu0 %v1861, 126
        %v1881 = vpop.permute.xlu0 %1880
        %1882 = vrot.lane.b32.xlu0 %v1863, 126
        %v1883 = vpop.permute.xlu0 %1882
        %1884 = vrot.lane.b32.xlu0 %v1862, 126
        %v1885 = vpop.permute.xlu0 %1884
        %1886 = vrot.lane.b32.xlu0 %v1866, 126
        %v1887 = vpop.permute.xlu0 %1886
        %1888 = vrot.lane.b32.xlu0 %v1868, 126
        %v1889 = vpop.permute.xlu0 %1888
        %1890 = vrot.lane.b32.xlu0 %v1867, 126
        %v1891 = vpop.permute.xlu0 %1890
        %1892 = vrot.lane.b32.xlu0 %v1871, 126
        %v1893 = vpop.permute.xlu0 %1892
        %1894 = vrot.lane.b32.xlu0 %v1873, 126
        %v1895 = vpop.permute.xlu0 %1894
        %1896 = vrot.lane.b32.xlu0 %v1872, 126
        %v1897 = vpop.permute.xlu0 %1896
        %v1910 = vadd.f32 %v1818, %v1875
        %v1911 = vadd.f32 %v1819, %v1877
        %v1912 = vadd.f32 %v1820, %v1879
        %v1913 = vadd.f32 %v1821, %v1881
        %v1914 = vadd.f32 %v1822, %v1883
        %v1915 = vadd.f32 %v1823, %v1885
        %v1916 = vadd.f32 %v1824, %v1887
        %v1917 = vadd.f32 %v1825, %v1889
        %v1918 = vadd.f32 %v1826, %v1891
        %v1919 = vadd.f32 %v1827, %v1893
        %v1920 = vadd.f32 %v1828, %v1895
        %v1921 = vadd.f32 %v1829, %v1897
        %v1922 = vrot.slane %v526, 4
        %v1923 = vrot.slane %v527, 4
        %v1924 = vsel %vm1693, %v1922, %v1923
        %v1925 = vrot.slane %v528, 4
        %v1926 = vsel %vm1693, %v1923, %v1925
        %v1927 = vrot.slane %v529, 4
        %v1928 = vrot.slane %v530, 4
        %v1929 = vsel %vm1693, %v1927, %v1928
        %v1930 = vrot.slane %v531, 4
        %v1931 = vsel %vm1693, %v1928, %v1930
        %v1932 = vrot.slane %v532, 4
        %v1933 = vrot.slane %v533, 4
        %v1934 = vsel %vm1693, %v1932, %v1933
        %v1935 = vrot.slane %v534, 4
        %v1936 = vsel %vm1693, %v1933, %v1935
        %v1937 = vrot.slane %v535, 4
        %v1938 = vrot.slane %v536, 4
        %v1939 = vsel %vm1693, %v1937, %v1938
        %v1940 = vrot.slane %v537, 4
        %v1941 = vsel %vm1693, %v1938, %v1940
        %1942 = vrot.lane.b32.xlu0 %v1924, 125
        %v1943 = vpop.permute.xlu0 %1942
        %1944 = vrot.lane.b32.xlu0 %v1926, 125
        %v1945 = vpop.permute.xlu0 %1944
        %1946 = vrot.lane.b32.xlu0 %v1925, 125
        %v1947 = vpop.permute.xlu0 %1946
        %1948 = vrot.lane.b32.xlu0 %v1929, 125
        %v1949 = vpop.permute.xlu0 %1948
        %1950 = vrot.lane.b32.xlu0 %v1931, 125
        %v1951 = vpop.permute.xlu0 %1950
        %1952 = vrot.lane.b32.xlu0 %v1930, 125
        %v1953 = vpop.permute.xlu0 %1952
        %1954 = vrot.lane.b32.xlu0 %v1934, 125
        %v1955 = vpop.permute.xlu0 %1954
        %1956 = vrot.lane.b32.xlu0 %v1936, 125
        %v1957 = vpop.permute.xlu0 %1956
        %1958 = vrot.lane.b32.xlu0 %v1935, 125
        %v1959 = vpop.permute.xlu0 %1958
        %1960 = vrot.lane.b32.xlu0 %v1939, 125
        %v1961 = vpop.permute.xlu0 %1960
        %1962 = vrot.lane.b32.xlu0 %v1941, 125
        %v1963 = vpop.permute.xlu0 %1962
        %1964 = vrot.lane.b32.xlu0 %v1940, 125
        %v1965 = vpop.permute.xlu0 %1964
        %v1978 = vadd.f32 %v1910, %v1943
        %v1979 = vadd.f32 %v1911, %v1945
        %v1980 = vadd.f32 %v1912, %v1947
        %v1981 = vadd.f32 %v1913, %v1949
        %v1982 = vadd.f32 %v1914, %v1951
        %v1983 = vadd.f32 %v1915, %v1953
        %v1984 = vadd.f32 %v1916, %v1955
        %v1985 = vadd.f32 %v1917, %v1957
        %v1986 = vadd.f32 %v1918, %v1959
        %v1987 = vadd.f32 %v1919, %v1961
        %v1988 = vadd.f32 %v1920, %v1963
        %v1989 = vadd.f32 %v1921, %v1965
        %v1990 = vmul.f32 %v598, 0.55557024
        %v1991 = vmul.f32 %v599, 0.55557024
        %v1992 = vmul.f32 %v600, 0.55557024
        %v1993 = vmul.f32 %v601, 0.55557024
        %v1994 = vmul.f32 %v602, 0.55557024
        %v1995 = vmul.f32 %v603, 0.55557024
        %v1996 = vmul.f32 %v604, 0.55557024
        %v1997 = vmul.f32 %v605, 0.55557024
        %v1998 = vmul.f32 %v606, 0.55557024
        %v1999 = vmul.f32 %v607, 0.55557024
        %v2000 = vmul.f32 %v608, 0.55557024
        %v2001 = vmul.f32 %v609, 0.55557024
        %vm2014 = vcmask 1042432
        %v2015 = vrot.slane %v1990, 5
        %v2016 = vrot.slane %v1991, 5
        %v2017 = vsel %vm2014, %v2015, %v2016
        %v2018 = vrot.slane %v1992, 5
        %v2019 = vsel %vm2014, %v2016, %v2018
        %v2020 = vrot.slane %v1993, 5
        %v2021 = vrot.slane %v1994, 5
        %v2022 = vsel %vm2014, %v2020, %v2021
        %v2023 = vrot.slane %v1995, 5
        %v2024 = vsel %vm2014, %v2021, %v2023
        %v2025 = vrot.slane %v1996, 5
        %v2026 = vrot.slane %v1997, 5
        %v2027 = vsel %vm2014, %v2025, %v2026
        %v2028 = vrot.slane %v1998, 5
        %v2029 = vsel %vm2014, %v2026, %v2028
        %v2030 = vrot.slane %v1999, 5
        %v2031 = vrot.slane %v2000, 5
        %v2032 = vsel %vm2014, %v2030, %v2031
        %v2033 = vrot.slane %v2001, 5
        %v2034 = vsel %vm2014, %v2031, %v2033
        %v2047 = vadd.f32 %v1978, %v2017
        %v2048 = vadd.f32 %v1979, %v2019
        %v2049 = vadd.f32 %v1980, %v2018
        %v2050 = vadd.f32 %v1981, %v2022
        %v2051 = vadd.f32 %v1982, %v2024
        %v2052 = vadd.f32 %v1983, %v2023
        %v2053 = vadd.f32 %v1984, %v2027
        %v2054 = vadd.f32 %v1985, %v2029
        %v2055 = vadd.f32 %v1986, %v2028
        %v2056 = vadd.f32 %v1987, %v2032
        %v2057 = vadd.f32 %v1988, %v2034
        %v2058 = vadd.f32 %v1989, %v2033
        %v2059 = vmul.f32 %v679, -0.98078525
        %v2060 = vmul.f32 %v680, -0.98078525
        %v2061 = vmul.f32 %v681, -0.98078525
        %v2062 = vmul.f32 %v682, -0.98078525
        %v2063 = vmul.f32 %v683, -0.98078525
        %v2064 = vmul.f32 %v684, -0.98078525
        %v2065 = vmul.f32 %v685, -0.98078525
        %v2066 = vmul.f32 %v686, -0.98078525
        %v2067 = vmul.f32 %v687, -0.98078525
        %v2068 = vmul.f32 %v688, -0.98078525
        %v2069 = vmul.f32 %v689, -0.98078525
        %v2070 = vmul.f32 %v690, -0.98078525
        %v2083 = vrot.slane %v2059, 5
        %v2084 = vrot.slane %v2060, 5
        %v2085 = vsel %vm2014, %v2083, %v2084
        %v2086 = vrot.slane %v2061, 5
        %v2087 = vsel %vm2014, %v2084, %v2086
        %v2088 = vrot.slane %v2062, 5
        %v2089 = vrot.slane %v2063, 5
        %v2090 = vsel %vm2014, %v2088, %v2089
        %v2091 = vrot.slane %v2064, 5
        %v2092 = vsel %vm2014, %v2089, %v2091
        %v2093 = vrot.slane %v2065, 5
        %v2094 = vrot.slane %v2066, 5
        %v2095 = vsel %vm2014, %v2093, %v2094
        %v2096 = vrot.slane %v2067, 5
        %v2097 = vsel %vm2014, %v2094, %v2096
        %v2098 = vrot.slane %v2068, 5
        %v2099 = vrot.slane %v2069, 5
        %v2100 = vsel %vm2014, %v2098, %v2099
        %v2101 = vrot.slane %v2070, 5
        %v2102 = vsel %vm2014, %v2099, %v2101
        %2103 = vrot.lane.b32.xlu0 %v2085, 127
        %v2104 = vpop.permute.xlu0 %2103
        %2105 = vrot.lane.b32.xlu0 %v2087, 127
        %v2106 = vpop.permute.xlu0 %2105
        %2107 = vrot.lane.b32.xlu0 %v2086, 127
        %v2108 = vpop.permute.xlu0 %2107
        %2109 = vrot.lane.b32.xlu0 %v2090, 127
        %v2110 = vpop.permute.xlu0 %2109
        %2111 = vrot.lane.b32.xlu0 %v2092, 127
        %v2112 = vpop.permute.xlu0 %2111
        %2113 = vrot.lane.b32.xlu0 %v2091, 127
        %v2114 = vpop.permute.xlu0 %2113
        %2115 = vrot.lane.b32.xlu0 %v2095, 127
        %v2116 = vpop.permute.xlu0 %2115
        %2117 = vrot.lane.b32.xlu0 %v2097, 127
        %v2118 = vpop.permute.xlu0 %2117
        %2119 = vrot.lane.b32.xlu0 %v2096, 127
        %v2120 = vpop.permute.xlu0 %2119
        %2121 = vrot.lane.b32.xlu0 %v2100, 127
        %v2122 = vpop.permute.xlu0 %2121
        %2123 = vrot.lane.b32.xlu0 %v2102, 127
        %v2124 = vpop.permute.xlu0 %2123
        %2125 = vrot.lane.b32.xlu0 %v2101, 127
        %v2126 = vpop.permute.xlu0 %2125
        %v2139 = vadd.f32 %v2047, %v2104
        %v2140 = vadd.f32 %v2048, %v2106
        %v2141 = vadd.f32 %v2049, %v2108
        %v2142 = vadd.f32 %v2050, %v2110
        %v2143 = vadd.f32 %v2051, %v2112
        %v2144 = vadd.f32 %v2052, %v2114
        %v2145 = vadd.f32 %v2053, %v2116
        %v2146 = vadd.f32 %v2054, %v2118
        %v2147 = vadd.f32 %v2055, %v2120
        %v2148 = vadd.f32 %v2056, %v2122
        %v2149 = vadd.f32 %v2057, %v2124
        %v2150 = vadd.f32 %v2058, %v2126
        %v2151 = vmul.f32 %v783, 0.19509032
        %v2152 = vmul.f32 %v784, 0.19509032
        %v2153 = vmul.f32 %v785, 0.19509032
        %v2154 = vmul.f32 %v786, 0.19509032
        %v2155 = vmul.f32 %v787, 0.19509032
        %v2156 = vmul.f32 %v788, 0.19509032
        %v2157 = vmul.f32 %v789, 0.19509032
        %v2158 = vmul.f32 %v790, 0.19509032
        %v2159 = vmul.f32 %v791, 0.19509032
        %v2160 = vmul.f32 %v792, 0.19509032
        %v2161 = vmul.f32 %v793, 0.19509032
        %v2162 = vmul.f32 %v794, 0.19509032
        %v2175 = vrot.slane %v2151, 5
        %v2176 = vrot.slane %v2152, 5
        %v2177 = vsel %vm2014, %v2175, %v2176
        %v2178 = vrot.slane %v2153, 5
        %v2179 = vsel %vm2014, %v2176, %v2178
        %v2180 = vrot.slane %v2154, 5
        %v2181 = vrot.slane %v2155, 5
        %v2182 = vsel %vm2014, %v2180, %v2181
        %v2183 = vrot.slane %v2156, 5
        %v2184 = vsel %vm2014, %v2181, %v2183
        %v2185 = vrot.slane %v2157, 5
        %v2186 = vrot.slane %v2158, 5
        %v2187 = vsel %vm2014, %v2185, %v2186
        %v2188 = vrot.slane %v2159, 5
        %v2189 = vsel %vm2014, %v2186, %v2188
        %v2190 = vrot.slane %v2160, 5
        %v2191 = vrot.slane %v2161, 5
        %v2192 = vsel %vm2014, %v2190, %v2191
        %v2193 = vrot.slane %v2162, 5
        %v2194 = vsel %vm2014, %v2191, %v2193
        %2195 = vrot.lane.b32.xlu0 %v2177, 126
        %v2196 = vpop.permute.xlu0 %2195
        %2197 = vrot.lane.b32.xlu0 %v2179, 126
        %v2198 = vpop.permute.xlu0 %2197
        %2199 = vrot.lane.b32.xlu0 %v2178, 126
        %v2200 = vpop.permute.xlu0 %2199
        %2201 = vrot.lane.b32.xlu0 %v2182, 126
        %v2202 = vpop.permute.xlu0 %2201
        %2203 = vrot.lane.b32.xlu0 %v2184, 126
        %v2204 = vpop.permute.xlu0 %2203
        %2205 = vrot.lane.b32.xlu0 %v2183, 126
        %v2206 = vpop.permute.xlu0 %2205
        %2207 = vrot.lane.b32.xlu0 %v2187, 126
        %v2208 = vpop.permute.xlu0 %2207
        %2209 = vrot.lane.b32.xlu0 %v2189, 126
        %v2210 = vpop.permute.xlu0 %2209
        %2211 = vrot.lane.b32.xlu0 %v2188, 126
        %v2212 = vpop.permute.xlu0 %2211
        %2213 = vrot.lane.b32.xlu0 %v2192, 126
        %v2214 = vpop.permute.xlu0 %2213
        %2215 = vrot.lane.b32.xlu0 %v2194, 126
        %v2216 = vpop.permute.xlu0 %2215
        %2217 = vrot.lane.b32.xlu0 %v2193, 126
        %v2218 = vpop.permute.xlu0 %2217
        %v2231 = vadd.f32 %v2139, %v2196
        %v2232 = vadd.f32 %v2140, %v2198
        %v2233 = vadd.f32 %v2141, %v2200
        %v2234 = vadd.f32 %v2142, %v2202
        %v2235 = vadd.f32 %v2143, %v2204
        %v2236 = vadd.f32 %v2144, %v2206
        %v2237 = vadd.f32 %v2145, %v2208
        %v2238 = vadd.f32 %v2146, %v2210
        %v2239 = vadd.f32 %v2147, %v2212
        %v2240 = vadd.f32 %v2148, %v2214
        %v2241 = vadd.f32 %v2149, %v2216
        %v2242 = vadd.f32 %v2150, %v2218
        %v2243 = vmul.f32 %v887, 0.8314696
        %v2244 = vmul.f32 %v888, 0.8314696
        %v2245 = vmul.f32 %v889, 0.8314696
        %v2246 = vmul.f32 %v890, 0.8314696
        %v2247 = vmul.f32 %v891, 0.8314696
        %v2248 = vmul.f32 %v892, 0.8314696
        %v2249 = vmul.f32 %v893, 0.8314696
        %v2250 = vmul.f32 %v894, 0.8314696
        %v2251 = vmul.f32 %v895, 0.8314696
        %v2252 = vmul.f32 %v896, 0.8314696
        %v2253 = vmul.f32 %v897, 0.8314696
        %v2254 = vmul.f32 %v898, 0.8314696
        %v2267 = vrot.slane %v2243, 5
        %v2268 = vrot.slane %v2244, 5
        %v2269 = vsel %vm2014, %v2267, %v2268
        %v2270 = vrot.slane %v2245, 5
        %v2271 = vsel %vm2014, %v2268, %v2270
        %v2272 = vrot.slane %v2246, 5
        %v2273 = vrot.slane %v2247, 5
        %v2274 = vsel %vm2014, %v2272, %v2273
        %v2275 = vrot.slane %v2248, 5
        %v2276 = vsel %vm2014, %v2273, %v2275
        %v2277 = vrot.slane %v2249, 5
        %v2278 = vrot.slane %v2250, 5
        %v2279 = vsel %vm2014, %v2277, %v2278
        %v2280 = vrot.slane %v2251, 5
        %v2281 = vsel %vm2014, %v2278, %v2280
        %v2282 = vrot.slane %v2252, 5
        %v2283 = vrot.slane %v2253, 5
        %v2284 = vsel %vm2014, %v2282, %v2283
        %v2285 = vrot.slane %v2254, 5
        %v2286 = vsel %vm2014, %v2283, %v2285
        %2287 = vrot.lane.b32.xlu0 %v2269, 125
        %v2288 = vpop.permute.xlu0 %2287
        %2289 = vrot.lane.b32.xlu0 %v2271, 125
        %v2290 = vpop.permute.xlu0 %2289
        %2291 = vrot.lane.b32.xlu0 %v2270, 125
        %v2292 = vpop.permute.xlu0 %2291
        %2293 = vrot.lane.b32.xlu0 %v2274, 125
        %v2294 = vpop.permute.xlu0 %2293
        %2295 = vrot.lane.b32.xlu0 %v2276, 125
        %v2296 = vpop.permute.xlu0 %2295
        %2297 = vrot.lane.b32.xlu0 %v2275, 125
        %v2298 = vpop.permute.xlu0 %2297
        %2299 = vrot.lane.b32.xlu0 %v2279, 125
        %v2300 = vpop.permute.xlu0 %2299
        %2301 = vrot.lane.b32.xlu0 %v2281, 125
        %v2302 = vpop.permute.xlu0 %2301
        %2303 = vrot.lane.b32.xlu0 %v2280, 125
        %v2304 = vpop.permute.xlu0 %2303
        %2305 = vrot.lane.b32.xlu0 %v2284, 125
        %v2306 = vpop.permute.xlu0 %2305
        %2307 = vrot.lane.b32.xlu0 %v2286, 125
        %v2308 = vpop.permute.xlu0 %2307
        %2309 = vrot.lane.b32.xlu0 %v2285, 125
        %v2310 = vpop.permute.xlu0 %2309
        %v2323 = vadd.f32 %v2231, %v2288
        %v2324 = vadd.f32 %v2232, %v2290
        %v2325 = vadd.f32 %v2233, %v2292
        %v2326 = vadd.f32 %v2234, %v2294
        %v2327 = vadd.f32 %v2235, %v2296
        %v2328 = vadd.f32 %v2236, %v2298
        %v2329 = vadd.f32 %v2237, %v2300
        %v2330 = vadd.f32 %v2238, %v2302
        %v2331 = vadd.f32 %v2239, %v2304
        %v2332 = vadd.f32 %v2240, %v2306
        %v2333 = vadd.f32 %v2241, %v2308
        %v2334 = vadd.f32 %v2242, %v2310
        %v2335 = vmul.f32 %v202, 0.38268343
        %v2336 = vmul.f32 %v203, 0.38268343
        %v2337 = vmul.f32 %v204, 0.38268343
        %v2338 = vmul.f32 %v205, 0.38268343
        %v2339 = vmul.f32 %v206, 0.38268343
        %v2340 = vmul.f32 %v207, 0.38268343
        %v2341 = vmul.f32 %v208, 0.38268343
        %v2342 = vmul.f32 %v209, 0.38268343
        %v2343 = vmul.f32 %v210, 0.38268343
        %v2344 = vmul.f32 %v211, 0.38268343
        %v2345 = vmul.f32 %v212, 0.38268343
        %v2346 = vmul.f32 %v213, 0.38268343
        %vm2359 = vcmask 1041408
        %v2360 = vrot.slane %v2335, 6
        %v2361 = vrot.slane %v2336, 6
        %v2362 = vsel %vm2359, %v2360, %v2361
        %v2363 = vrot.slane %v2337, 6
        %v2364 = vsel %vm2359, %v2361, %v2363
        %v2365 = vrot.slane %v2338, 6
        %v2366 = vrot.slane %v2339, 6
        %v2367 = vsel %vm2359, %v2365, %v2366
        %v2368 = vrot.slane %v2340, 6
        %v2369 = vsel %vm2359, %v2366, %v2368
        %v2370 = vrot.slane %v2341, 6
        %v2371 = vrot.slane %v2342, 6
        %v2372 = vsel %vm2359, %v2370, %v2371
        %v2373 = vrot.slane %v2343, 6
        %v2374 = vsel %vm2359, %v2371, %v2373
        %v2375 = vrot.slane %v2344, 6
        %v2376 = vrot.slane %v2345, 6
        %v2377 = vsel %vm2359, %v2375, %v2376
        %v2378 = vrot.slane %v2346, 6
        %v2379 = vsel %vm2359, %v2376, %v2378
        %v2392 = vadd.f32 %v2323, %v2362
        %v2393 = vadd.f32 %v2324, %v2364
        %v2394 = vadd.f32 %v2325, %v2363
        %v2395 = vadd.f32 %v2326, %v2367
        %v2396 = vadd.f32 %v2327, %v2369
        %v2397 = vadd.f32 %v2328, %v2368
        %v2398 = vadd.f32 %v2329, %v2372
        %v2399 = vadd.f32 %v2330, %v2374
        %v2400 = vadd.f32 %v2331, %v2373
        %v2401 = vadd.f32 %v2332, %v2377
        %v2402 = vadd.f32 %v2333, %v2379
        %v2403 = vadd.f32 %v2334, %v2378
        %v2404 = vmul.f32 %v274, -0.9238795
        %v2405 = vmul.f32 %v275, -0.9238795
        %v2406 = vmul.f32 %v276, -0.9238795
        %v2407 = vmul.f32 %v277, -0.9238795
        %v2408 = vmul.f32 %v278, -0.9238795
        %v2409 = vmul.f32 %v279, -0.9238795
        %v2410 = vmul.f32 %v280, -0.9238795
        %v2411 = vmul.f32 %v281, -0.9238795
        %v2412 = vmul.f32 %v282, -0.9238795
        %v2413 = vmul.f32 %v283, -0.9238795
        %v2414 = vmul.f32 %v284, -0.9238795
        %v2415 = vmul.f32 %v285, -0.9238795
        %v2428 = vrot.slane %v2404, 6
        %v2429 = vrot.slane %v2405, 6
        %v2430 = vsel %vm2359, %v2428, %v2429
        %v2431 = vrot.slane %v2406, 6
        %v2432 = vsel %vm2359, %v2429, %v2431
        %v2433 = vrot.slane %v2407, 6
        %v2434 = vrot.slane %v2408, 6
        %v2435 = vsel %vm2359, %v2433, %v2434
        %v2436 = vrot.slane %v2409, 6
        %v2437 = vsel %vm2359, %v2434, %v2436
        %v2438 = vrot.slane %v2410, 6
        %v2439 = vrot.slane %v2411, 6
        %v2440 = vsel %vm2359, %v2438, %v2439
        %v2441 = vrot.slane %v2412, 6
        %v2442 = vsel %vm2359, %v2439, %v2441
        %v2443 = vrot.slane %v2413, 6
        %v2444 = vrot.slane %v2414, 6
        %v2445 = vsel %vm2359, %v2443, %v2444
        %v2446 = vrot.slane %v2415, 6
        %v2447 = vsel %vm2359, %v2444, %v2446
        %2448 = vrot.lane.b32.xlu0 %v2430, 127
        %v2449 = vpop.permute.xlu0 %2448
        %2450 = vrot.lane.b32.xlu0 %v2432, 127
        %v2451 = vpop.permute.xlu0 %2450
        %2452 = vrot.lane.b32.xlu0 %v2431, 127
        %v2453 = vpop.permute.xlu0 %2452
        %2454 = vrot.lane.b32.xlu0 %v2435, 127
        %v2455 = vpop.permute.xlu0 %2454
        %2456 = vrot.lane.b32.xlu0 %v2437, 127
        %v2457 = vpop.permute.xlu0 %2456
        %2458 = vrot.lane.b32.xlu0 %v2436, 127
        %v2459 = vpop.permute.xlu0 %2458
        %2460 = vrot.lane.b32.xlu0 %v2440, 127
        %v2461 = vpop.permute.xlu0 %2460
        %2462 = vrot.lane.b32.xlu0 %v2442, 127
        %v2463 = vpop.permute.xlu0 %2462
        %2464 = vrot.lane.b32.xlu0 %v2441, 127
        %v2465 = vpop.permute.xlu0 %2464
        %2466 = vrot.lane.b32.xlu0 %v2445, 127
        %v2467 = vpop.permute.xlu0 %2466
        %2468 = vrot.lane.b32.xlu0 %v2447, 127
        %v2469 = vpop.permute.xlu0 %2468
        %2470 = vrot.lane.b32.xlu0 %v2446, 127
        %v2471 = vpop.permute.xlu0 %2470
        %v2484 = vadd.f32 %v2392, %v2449
        %v2485 = vadd.f32 %v2393, %v2451
        %v2486 = vadd.f32 %v2394, %v2453
        %v2487 = vadd.f32 %v2395, %v2455
        %v2488 = vadd.f32 %v2396, %v2457
        %v2489 = vadd.f32 %v2397, %v2459
        %v2490 = vadd.f32 %v2398, %v2461
        %v2491 = vadd.f32 %v2399, %v2463
        %v2492 = vadd.f32 %v2400, %v2465
        %v2493 = vadd.f32 %v2401, %v2467
        %v2494 = vadd.f32 %v2402, %v2469
        %v2495 = vadd.f32 %v2403, %v2471
        %v2496 = vmul.f32 %v394, 0.9238795
        %v2497 = vmul.f32 %v395, 0.9238795
        %v2498 = vmul.f32 %v396, 0.9238795
        %v2499 = vmul.f32 %v397, 0.9238795
        %v2500 = vmul.f32 %v398, 0.9238795
        %v2501 = vmul.f32 %v399, 0.9238795
        %v2502 = vmul.f32 %v400, 0.9238795
        %v2503 = vmul.f32 %v401, 0.9238795
        %v2504 = vmul.f32 %v402, 0.9238795
        %v2505 = vmul.f32 %v403, 0.9238795
        %v2506 = vmul.f32 %v404, 0.9238795
        %v2507 = vmul.f32 %v405, 0.9238795
        %v2520 = vrot.slane %v2496, 6
        %v2521 = vrot.slane %v2497, 6
        %v2522 = vsel %vm2359, %v2520, %v2521
        %v2523 = vrot.slane %v2498, 6
        %v2524 = vsel %vm2359, %v2521, %v2523
        %v2525 = vrot.slane %v2499, 6
        %v2526 = vrot.slane %v2500, 6
        %v2527 = vsel %vm2359, %v2525, %v2526
        %v2528 = vrot.slane %v2501, 6
        %v2529 = vsel %vm2359, %v2526, %v2528
        %v2530 = vrot.slane %v2502, 6
        %v2531 = vrot.slane %v2503, 6
        %v2532 = vsel %vm2359, %v2530, %v2531
        %v2533 = vrot.slane %v2504, 6
        %v2534 = vsel %vm2359, %v2531, %v2533
        %v2535 = vrot.slane %v2505, 6
        %v2536 = vrot.slane %v2506, 6
        %v2537 = vsel %vm2359, %v2535, %v2536
        %v2538 = vrot.slane %v2507, 6
        %v2539 = vsel %vm2359, %v2536, %v2538
        %2540 = vrot.lane.b32.xlu0 %v2522, 126
        %v2541 = vpop.permute.xlu0 %2540
        %2542 = vrot.lane.b32.xlu0 %v2524, 126
        %v2543 = vpop.permute.xlu0 %2542
        %2544 = vrot.lane.b32.xlu0 %v2523, 126
        %v2545 = vpop.permute.xlu0 %2544
        %2546 = vrot.lane.b32.xlu0 %v2527, 126
        %v2547 = vpop.permute.xlu0 %2546
        %2548 = vrot.lane.b32.xlu0 %v2529, 126
        %v2549 = vpop.permute.xlu0 %2548
        %2550 = vrot.lane.b32.xlu0 %v2528, 126
        %v2551 = vpop.permute.xlu0 %2550
        %2552 = vrot.lane.b32.xlu0 %v2532, 126
        %v2553 = vpop.permute.xlu0 %2552
        %2554 = vrot.lane.b32.xlu0 %v2534, 126
        %v2555 = vpop.permute.xlu0 %2554
        %2556 = vrot.lane.b32.xlu0 %v2533, 126
        %v2557 = vpop.permute.xlu0 %2556
        %2558 = vrot.lane.b32.xlu0 %v2537, 126
        %v2559 = vpop.permute.xlu0 %2558
        %2560 = vrot.lane.b32.xlu0 %v2539, 126
        %v2561 = vpop.permute.xlu0 %2560
        %2562 = vrot.lane.b32.xlu0 %v2538, 126
        %v2563 = vpop.permute.xlu0 %2562
        %v2576 = vadd.f32 %v2484, %v2541
        %v2577 = vadd.f32 %v2485, %v2543
        %v2578 = vadd.f32 %v2486, %v2545
        %v2579 = vadd.f32 %v2487, %v2547
        %v2580 = vadd.f32 %v2488, %v2549
        %v2581 = vadd.f32 %v2489, %v2551
        %v2582 = vadd.f32 %v2490, %v2553
        %v2583 = vadd.f32 %v2491, %v2555
        %v2584 = vadd.f32 %v2492, %v2557
        %v2585 = vadd.f32 %v2493, %v2559
        %v2586 = vadd.f32 %v2494, %v2561
        %v2587 = vadd.f32 %v2495, %v2563
        %v2588 = vmul.f32 %v514, -0.38268343
        %v2589 = vmul.f32 %v515, -0.38268343
        %v2590 = vmul.f32 %v516, -0.38268343
        %v2591 = vmul.f32 %v517, -0.38268343
        %v2592 = vmul.f32 %v518, -0.38268343
        %v2593 = vmul.f32 %v519, -0.38268343
        %v2594 = vmul.f32 %v520, -0.38268343
        %v2595 = vmul.f32 %v521, -0.38268343
        %v2596 = vmul.f32 %v522, -0.38268343
        %v2597 = vmul.f32 %v523, -0.38268343
        %v2598 = vmul.f32 %v524, -0.38268343
        %v2599 = vmul.f32 %v525, -0.38268343
        %v2612 = vrot.slane %v2588, 6
        %v2613 = vrot.slane %v2589, 6
        %v2614 = vsel %vm2359, %v2612, %v2613
        %v2615 = vrot.slane %v2590, 6
        %v2616 = vsel %vm2359, %v2613, %v2615
        %v2617 = vrot.slane %v2591, 6
        %v2618 = vrot.slane %v2592, 6
        %v2619 = vsel %vm2359, %v2617, %v2618
        %v2620 = vrot.slane %v2593, 6
        %v2621 = vsel %vm2359, %v2618, %v2620
        %v2622 = vrot.slane %v2594, 6
        %v2623 = vrot.slane %v2595, 6
        %v2624 = vsel %vm2359, %v2622, %v2623
        %v2625 = vrot.slane %v2596, 6
        %v2626 = vsel %vm2359, %v2623, %v2625
        %v2627 = vrot.slane %v2597, 6
        %v2628 = vrot.slane %v2598, 6
        %v2629 = vsel %vm2359, %v2627, %v2628
        %v2630 = vrot.slane %v2599, 6
        %v2631 = vsel %vm2359, %v2628, %v2630
        %2632 = vrot.lane.b32.xlu0 %v2614, 125
        %v2633 = vpop.permute.xlu0 %2632
        %2634 = vrot.lane.b32.xlu0 %v2616, 125
        %v2635 = vpop.permute.xlu0 %2634
        %2636 = vrot.lane.b32.xlu0 %v2615, 125
        %v2637 = vpop.permute.xlu0 %2636
        %2638 = vrot.lane.b32.xlu0 %v2619, 125
        %v2639 = vpop.permute.xlu0 %2638
        %2640 = vrot.lane.b32.xlu0 %v2621, 125
        %v2641 = vpop.permute.xlu0 %2640
        %2642 = vrot.lane.b32.xlu0 %v2620, 125
        %v2643 = vpop.permute.xlu0 %2642
        %2644 = vrot.lane.b32.xlu0 %v2624, 125
        %v2645 = vpop.permute.xlu0 %2644
        %2646 = vrot.lane.b32.xlu0 %v2626, 125
        %v2647 = vpop.permute.xlu0 %2646
        %2648 = vrot.lane.b32.xlu0 %v2625, 125
        %v2649 = vpop.permute.xlu0 %2648
        %2650 = vrot.lane.b32.xlu0 %v2629, 125
        %v2651 = vpop.permute.xlu0 %2650
        %2652 = vrot.lane.b32.xlu0 %v2631, 125
        %v2653 = vpop.permute.xlu0 %2652
        %2654 = vrot.lane.b32.xlu0 %v2630, 125
        %v2655 = vpop.permute.xlu0 %2654
        %v2668 = vadd.f32 %v2576, %v2633
        %v2669 = vadd.f32 %v2577, %v2635
        %v2670 = vadd.f32 %v2578, %v2637
        %v2671 = vadd.f32 %v2579, %v2639
        %v2672 = vadd.f32 %v2580, %v2641
        %v2673 = vadd.f32 %v2581, %v2643
        %v2674 = vadd.f32 %v2582, %v2645
        %v2675 = vadd.f32 %v2583, %v2647
        %v2676 = vadd.f32 %v2584, %v2649
        %v2677 = vadd.f32 %v2585, %v2651
        %v2678 = vadd.f32 %v2586, %v2653
        %v2679 = vadd.f32 %v2587, %v2655
        %v2680 = vmul.f32 %v598, 0.19509032
        %v2681 = vmul.f32 %v599, 0.19509032
        %v2682 = vmul.f32 %v600, 0.19509032
        %v2683 = vmul.f32 %v601, 0.19509032
        %v2684 = vmul.f32 %v602, 0.19509032
        %v2685 = vmul.f32 %v603, 0.19509032
        %v2686 = vmul.f32 %v604, 0.19509032
        %v2687 = vmul.f32 %v605, 0.19509032
        %v2688 = vmul.f32 %v606, 0.19509032
        %v2689 = vmul.f32 %v607, 0.19509032
        %v2690 = vmul.f32 %v608, 0.19509032
        %v2691 = vmul.f32 %v609, 0.19509032
        %vm2704 = vcmask 1040384
        %v2705 = vrot.slane %v2680, 7
        %v2706 = vrot.slane %v2681, 7
        %v2707 = vsel %vm2704, %v2705, %v2706
        %v2708 = vrot.slane %v2682, 7
        %v2709 = vsel %vm2704, %v2706, %v2708
        %v2710 = vrot.slane %v2683, 7
        %v2711 = vrot.slane %v2684, 7
        %v2712 = vsel %vm2704, %v2710, %v2711
        %v2713 = vrot.slane %v2685, 7
        %v2714 = vsel %vm2704, %v2711, %v2713
        %v2715 = vrot.slane %v2686, 7
        %v2716 = vrot.slane %v2687, 7
        %v2717 = vsel %vm2704, %v2715, %v2716
        %v2718 = vrot.slane %v2688, 7
        %v2719 = vsel %vm2704, %v2716, %v2718
        %v2720 = vrot.slane %v2689, 7
        %v2721 = vrot.slane %v2690, 7
        %v2722 = vsel %vm2704, %v2720, %v2721
        %v2723 = vrot.slane %v2691, 7
        %v2724 = vsel %vm2704, %v2721, %v2723
        %v2737 = vadd.f32 %v2668, %v2707
        %v2738 = vadd.f32 %v2669, %v2709
        %v2739 = vadd.f32 %v2670, %v2708
        %v2740 = vadd.f32 %v2671, %v2712
        %v2741 = vadd.f32 %v2672, %v2714
        %v2742 = vadd.f32 %v2673, %v2713
        %v2743 = vadd.f32 %v2674, %v2717
        %v2744 = vadd.f32 %v2675, %v2719
        %v2745 = vadd.f32 %v2676, %v2718
        %v2746 = vadd.f32 %v2677, %v2722
        %v2747 = vadd.f32 %v2678, %v2724
        %v2748 = vadd.f32 %v2679, %v2723
        %v2749 = vmul.f32 %v679, -0.55557024
        %v2750 = vmul.f32 %v680, -0.55557024
        %v2751 = vmul.f32 %v681, -0.55557024
        %v2752 = vmul.f32 %v682, -0.55557024
        %v2753 = vmul.f32 %v683, -0.55557024
        %v2754 = vmul.f32 %v684, -0.55557024
        %v2755 = vmul.f32 %v685, -0.55557024
        %v2756 = vmul.f32 %v686, -0.55557024
        %v2757 = vmul.f32 %v687, -0.55557024
        %v2758 = vmul.f32 %v688, -0.55557024
        %v2759 = vmul.f32 %v689, -0.55557024
        %v2760 = vmul.f32 %v690, -0.55557024
        %v2773 = vrot.slane %v2749, 7
        %v2774 = vrot.slane %v2750, 7
        %v2775 = vsel %vm2704, %v2773, %v2774
        %v2776 = vrot.slane %v2751, 7
        %v2777 = vsel %vm2704, %v2774, %v2776
        %v2778 = vrot.slane %v2752, 7
        %v2779 = vrot.slane %v2753, 7
        %v2780 = vsel %vm2704, %v2778, %v2779
        %v2781 = vrot.slane %v2754, 7
        %v2782 = vsel %vm2704, %v2779, %v2781
        %v2783 = vrot.slane %v2755, 7
        %v2784 = vrot.slane %v2756, 7
        %v2785 = vsel %vm2704, %v2783, %v2784
        %v2786 = vrot.slane %v2757, 7
        %v2787 = vsel %vm2704, %v2784, %v2786
        %v2788 = vrot.slane %v2758, 7
        %v2789 = vrot.slane %v2759, 7
        %v2790 = vsel %vm2704, %v2788, %v2789
        %v2791 = vrot.slane %v2760, 7
        %v2792 = vsel %vm2704, %v2789, %v2791
        %2793 = vrot.lane.b32.xlu0 %v2775, 127
        %v2794 = vpop.permute.xlu0 %2793
        %2795 = vrot.lane.b32.xlu0 %v2777, 127
        %v2796 = vpop.permute.xlu0 %2795
        %2797 = vrot.lane.b32.xlu0 %v2776, 127
        %v2798 = vpop.permute.xlu0 %2797
        %2799 = vrot.lane.b32.xlu0 %v2780, 127
        %v2800 = vpop.permute.xlu0 %2799
        %2801 = vrot.lane.b32.xlu0 %v2782, 127
        %v2802 = vpop.permute.xlu0 %2801
        %2803 = vrot.lane.b32.xlu0 %v2781, 127
        %v2804 = vpop.permute.xlu0 %2803
        %2805 = vrot.lane.b32.xlu0 %v2785, 127
        %v2806 = vpop.permute.xlu0 %2805
        %2807 = vrot.lane.b32.xlu0 %v2787, 127
        %v2808 = vpop.permute.xlu0 %2807
        %2809 = vrot.lane.b32.xlu0 %v2786, 127
        %v2810 = vpop.permute.xlu0 %2809
        %2811 = vrot.lane.b32.xlu0 %v2790, 127
        %v2812 = vpop.permute.xlu0 %2811
        %2813 = vrot.lane.b32.xlu0 %v2792, 127
        %v2814 = vpop.permute.xlu0 %2813
        %2815 = vrot.lane.b32.xlu0 %v2791, 127
        %v2816 = vpop.permute.xlu0 %2815
        %v2829 = vadd.f32 %v2737, %v2794
        %v2830 = vadd.f32 %v2738, %v2796
        %v2831 = vadd.f32 %v2739, %v2798
        %v2832 = vadd.f32 %v2740, %v2800
        %v2833 = vadd.f32 %v2741, %v2802
        %v2834 = vadd.f32 %v2742, %v2804
        %v2835 = vadd.f32 %v2743, %v2806
        %v2836 = vadd.f32 %v2744, %v2808
        %v2837 = vadd.f32 %v2745, %v2810
        %v2838 = vadd.f32 %v2746, %v2812
        %v2839 = vadd.f32 %v2747, %v2814
        %v2840 = vadd.f32 %v2748, %v2816
        %v2841 = vmul.f32 %v783, 0.8314696
        %v2842 = vmul.f32 %v784, 0.8314696
        %v2843 = vmul.f32 %v785, 0.8314696
        %v2844 = vmul.f32 %v786, 0.8314696
        %v2845 = vmul.f32 %v787, 0.8314696
        %v2846 = vmul.f32 %v788, 0.8314696
        %v2847 = vmul.f32 %v789, 0.8314696
        %v2848 = vmul.f32 %v790, 0.8314696
        %v2849 = vmul.f32 %v791, 0.8314696
        %v2850 = vmul.f32 %v792, 0.8314696
        %v2851 = vmul.f32 %v793, 0.8314696
        %v2852 = vmul.f32 %v794, 0.8314696
        %v2865 = vrot.slane %v2841, 7
        %v2866 = vrot.slane %v2842, 7
        %v2867 = vsel %vm2704, %v2865, %v2866
        %v2868 = vrot.slane %v2843, 7
        %v2869 = vsel %vm2704, %v2866, %v2868
        %v2870 = vrot.slane %v2844, 7
        %v2871 = vrot.slane %v2845, 7
        %v2872 = vsel %vm2704, %v2870, %v2871
        %v2873 = vrot.slane %v2846, 7
        %v2874 = vsel %vm2704, %v2871, %v2873
        %v2875 = vrot.slane %v2847, 7
        %v2876 = vrot.slane %v2848, 7
        %v2877 = vsel %vm2704, %v2875, %v2876
        %v2878 = vrot.slane %v2849, 7
        %v2879 = vsel %vm2704, %v2876, %v2878
        %v2880 = vrot.slane %v2850, 7
        %v2881 = vrot.slane %v2851, 7
        %v2882 = vsel %vm2704, %v2880, %v2881
        %v2883 = vrot.slane %v2852, 7
        %v2884 = vsel %vm2704, %v2881, %v2883
        %2885 = vrot.lane.b32.xlu0 %v2867, 126
        %v2886 = vpop.permute.xlu0 %2885
        %2887 = vrot.lane.b32.xlu0 %v2869, 126
        %v2888 = vpop.permute.xlu0 %2887
        %2889 = vrot.lane.b32.xlu0 %v2868, 126
        %v2890 = vpop.permute.xlu0 %2889
        %2891 = vrot.lane.b32.xlu0 %v2872, 126
        %v2892 = vpop.permute.xlu0 %2891
        %2893 = vrot.lane.b32.xlu0 %v2874, 126
        %v2894 = vpop.permute.xlu0 %2893
        %2895 = vrot.lane.b32.xlu0 %v2873, 126
        %v2896 = vpop.permute.xlu0 %2895
        %2897 = vrot.lane.b32.xlu0 %v2877, 126
        %v2898 = vpop.permute.xlu0 %2897
        %2899 = vrot.lane.b32.xlu0 %v2879, 126
        %v2900 = vpop.permute.xlu0 %2899
        %2901 = vrot.lane.b32.xlu0 %v2878, 126
        %v2902 = vpop.permute.xlu0 %2901
        %2903 = vrot.lane.b32.xlu0 %v2882, 126
        %v2904 = vpop.permute.xlu0 %2903
        %2905 = vrot.lane.b32.xlu0 %v2884, 126
        %v2906 = vpop.permute.xlu0 %2905
        %2907 = vrot.lane.b32.xlu0 %v2883, 126
        %v2908 = vpop.permute.xlu0 %2907
        %v2921 = vadd.f32 %v2829, %v2886
        %v2922 = vadd.f32 %v2830, %v2888
        %v2923 = vadd.f32 %v2831, %v2890
        %v2924 = vadd.f32 %v2832, %v2892
        %v2925 = vadd.f32 %v2833, %v2894
        %v2926 = vadd.f32 %v2834, %v2896
        %v2927 = vadd.f32 %v2835, %v2898
        %v2928 = vadd.f32 %v2836, %v2900
        %v2929 = vadd.f32 %v2837, %v2902
        %v2930 = vadd.f32 %v2838, %v2904
        %v2931 = vadd.f32 %v2839, %v2906
        %v2932 = vadd.f32 %v2840, %v2908
        %v2933 = vmul.f32 %v887, -0.98078525
        %v2934 = vmul.f32 %v888, -0.98078525
        %v2935 = vmul.f32 %v889, -0.98078525
        %v2936 = vmul.f32 %v890, -0.98078525
        %v2937 = vmul.f32 %v891, -0.98078525
        %v2938 = vmul.f32 %v892, -0.98078525
        %v2939 = vmul.f32 %v893, -0.98078525
        %v2940 = vmul.f32 %v894, -0.98078525
        %v2941 = vmul.f32 %v895, -0.98078525
        %v2942 = vmul.f32 %v896, -0.98078525
        %v2943 = vmul.f32 %v897, -0.98078525
        %v2944 = vmul.f32 %v898, -0.98078525
        %v2957 = vrot.slane %v2933, 7
        %v2958 = vrot.slane %v2934, 7
        %v2959 = vsel %vm2704, %v2957, %v2958
        %v2960 = vrot.slane %v2935, 7
        %v2961 = vsel %vm2704, %v2958, %v2960
        %v2962 = vrot.slane %v2936, 7
        %v2963 = vrot.slane %v2937, 7
        %v2964 = vsel %vm2704, %v2962, %v2963
        %v2965 = vrot.slane %v2938, 7
        %v2966 = vsel %vm2704, %v2963, %v2965
        %v2967 = vrot.slane %v2939, 7
        %v2968 = vrot.slane %v2940, 7
        %v2969 = vsel %vm2704, %v2967, %v2968
        %v2970 = vrot.slane %v2941, 7
        %v2971 = vsel %vm2704, %v2968, %v2970
        %v2972 = vrot.slane %v2942, 7
        %v2973 = vrot.slane %v2943, 7
        %v2974 = vsel %vm2704, %v2972, %v2973
        %v2975 = vrot.slane %v2944, 7
        %v2976 = vsel %vm2704, %v2973, %v2975
        %2977 = vrot.lane.b32.xlu0 %v2959, 125
        %v2978 = vpop.permute.xlu0 %2977
        %2979 = vrot.lane.b32.xlu0 %v2961, 125
        %v2980 = vpop.permute.xlu0 %2979
        %2981 = vrot.lane.b32.xlu0 %v2960, 125
        %v2982 = vpop.permute.xlu0 %2981
        %2983 = vrot.lane.b32.xlu0 %v2964, 125
        %v2984 = vpop.permute.xlu0 %2983
        %2985 = vrot.lane.b32.xlu0 %v2966, 125
        %v2986 = vpop.permute.xlu0 %2985
        %2987 = vrot.lane.b32.xlu0 %v2965, 125
        %v2988 = vpop.permute.xlu0 %2987
        %2989 = vrot.lane.b32.xlu0 %v2969, 125
        %v2990 = vpop.permute.xlu0 %2989
        %2991 = vrot.lane.b32.xlu0 %v2971, 125
        %v2992 = vpop.permute.xlu0 %2991
        %2993 = vrot.lane.b32.xlu0 %v2970, 125
        %v2994 = vpop.permute.xlu0 %2993
        %2995 = vrot.lane.b32.xlu0 %v2974, 125
        %v2996 = vpop.permute.xlu0 %2995
        %2997 = vrot.lane.b32.xlu0 %v2976, 125
        %v2998 = vpop.permute.xlu0 %2997
        %2999 = vrot.lane.b32.xlu0 %v2975, 125
        %v3000 = vpop.permute.xlu0 %2999
        %v3013 = vadd.f32 %v2921, %v2978
        %v3014 = vadd.f32 %v2922, %v2980
        %v3015 = vadd.f32 %v2923, %v2982
        %v3016 = vadd.f32 %v2924, %v2984
        %v3017 = vadd.f32 %v2925, %v2986
        %v3018 = vadd.f32 %v2926, %v2988
        %v3019 = vadd.f32 %v2927, %v2990
        %v3020 = vadd.f32 %v2928, %v2992
        %v3021 = vadd.f32 %v2929, %v2994
        %v3022 = vadd.f32 %v2930, %v2996
        %v3023 = vadd.f32 %v2931, %v2998
        %v3024 = vadd.f32 %v2932, %v3000
        %vm3025 = vcmask 138240
        %3026 = vst.msk [vmem:[%s140] sm:$0xff] %vm3025, %v3013
        %3027 = vst.msk [vmem:[%s140 + $0x8] sm:$0xff] %vm3025, %v3014
        %vm3028 = vcmask 131072
        %3029 = vst.msk [vmem:[%s140 + $0x10] sm:$0x1] %vm3028, %v3015
        %3030 = vst.msk [vmem:[%s140 + $0x18] sm:$0xff] %vm3025, %v3016
        %3031 = vst.msk [vmem:[%s140 + $0x20] sm:$0xff] %vm3025, %v3017
        %3032 = vst.msk [vmem:[%s140 + $0x28] sm:$0x1] %vm3028, %v3018
        %3033 = vst.msk [vmem:[%s140 + $0x30] sm:$0xff] %vm3025, %v3019
        %3034 = vst.msk [vmem:[%s140 + $0x38] sm:$0xff] %vm3025, %v3020
        %3035 = vst.msk [vmem:[%s140 + $0x40] sm:$0x1] %vm3028, %v3021
        %3036 = vst.msk [vmem:[%s140 + $0x48] sm:$0xff] %vm3025, %v3022
        %3037 = vst.msk [vmem:[%s140 + $0x50] sm:$0xff] %vm3025, %v3023
        %3038 = vst.msk [vmem:[%s140 + $0x58] sm:$0x1] %vm3028, %v3024
        %s3039 = smul.u32 4, %s15
        %p3040 = scmp.lt.s32.totalorder %s3039, 7
        %s3041 = scalar_select %p3040, %s3039, 7
        %s3042 = smul.addr %s3041, 3
        %s3043 = smul.addr %s3042, 8
        %s3044 = scalar_lea.vmem %s1, %s3043
        // Predicated region
        $region29: #{tpu_custom_call.1} parent=23 // pred_check
          %p3045 = pneg %p59
        $region30: #{tpu_custom_call.1} parent=23 // pred_check_branch
          %3047 = sbr.rel (%p3045) target = $region32
        $region31: #{tpu_custom_call.1} parent=23 // pred_region
          %s3048 = smul.u32 4, %s15
        $region32: #{tpu_custom_call.1} parent=23 // pred_fallthru
          _
      $region24: #{tpu_custom_call.1} parent=5 // pred_fallthru
        _
      %p3049 = scmp.le.s32.totalorder 2, %s10
      // Predicated region
      $region33: #{tpu_custom_call.1} parent=5 // pred_check
        %p3050 = pneg %p3049
      $region34: #{tpu_custom_call.1} parent=5 // pred_check_branch
        %3052 = sbr.rel (%p3050) target = $region36
      $region35: #{tpu_custom_call.1} parent=5 // pred_region
        %s3053 = ssub.s32 %s10, 2
        // Predicated region
        $region37: #{tpu_custom_call.1} parent=35 // pred_check
          %p3054 = pneg %p65
        $region38: #{tpu_custom_call.1} parent=35 // pred_check_branch
          %3056 = sbr.rel (%p3054) target = $region40
        $region39: #{tpu_custom_call.1} parent=35 // pred_region
          %s3057 = smul.u32 4, %s16
          %p3058 = scmp.lt.s32.totalorder %s3057, 7
          %s3059 = scalar_select %p3058, %s3057, 7
          %s3060 = smul.addr %s3059, 3
          %s3061 = smul.addr %s3060, 8
          %s3062 = scalar_lea.vmem %s1, %s3061
        $region40: #{tpu_custom_call.1} parent=35 // pred_fallthru
          _
      $region36: #{tpu_custom_call.1} parent=5 // pred_fallthru
        _
    $region6: #{tpu_custom_call.1} parent=1 // loop_footer
      %s14 = sadd.s32 1, %s10
    $region7: #{tpu_custom_call.1} parent=1 // loop_footer_branch
      %9 = sbr.rel target = $region3
    $region8: #{tpu_custom_call.1} parent=1 // loop_exit
      _
    %3063 = vsyncpa [#allocation3], 1
    %s3064 = scalar_lea.sflag [#allocation3], 1
    %3065 = vsyncpa %s3064, 1

</llo_original>
